<compile_context>
chip_gen: v7x
topology: tpu7x:2x2x1
jax: 0.10.0
libtpu: 0.0.40
codegen_flags: <defaults>
</compile_context>

<pallas_src>
import functools

import jax
import jax.numpy as jnp
from jax.experimental import pallas as pl
from jax.experimental.pallas import tpu as pltpu

BN_EPS = 1e-5


def _round_up(x, m):
    return (x + m - 1) // m * m


# ----------------------------- Pallas kernels -------------------------------


def _conv_bias_stats_kernel(x_ref, w_ref, b_ref, mask_ref,
                            y_ref, sum_ref, ssq_ref,
                            *, k, cp, cop, wp, hwp):
    """Pass 1 of Conv+BN for one image: conv(x) + bias, accumulate BN stats.

    x_ref    : [cp, Lp]          bf16  zero-padded image, row-major flattened
    w_ref    : [k*k, cop, cp]    bf16  per-tap weight matrices
    b_ref    : [cop, 1]          f32
    mask_ref : [1, hwp]          f32   1.0 on valid output columns, 0.0 on pad
    y_ref    : [cop, hwp]        f32   raw conv output (pre-BN), wide layout
    sum_ref  : [cop, 1]          f32   running per-channel sum    (resident)
    ssq_ref  : [cop, 1]          f32   running per-channel sum-sq (resident)
    """
    @pl.when(pl.program_id(0) == 0)
    def _init():
        sum_ref[...] = jnp.zeros_like(sum_ref)
        ssq_ref[...] = jnp.zeros_like(ssq_ref)

    xv = x_ref[...]                                   # [cp, Lp] bf16 (one load)
    acc = jnp.zeros((cop, hwp), jnp.float32)
    # Output flat position q (= h*wp + w) reads padded-input flat position
    # (h+dh)*wp + (w+dw) = (dh*wp + dw) + q, so every tap is a *static*
    # lane-offset slice of the flattened padded image -> no im2col, no reshape.
    for dh in range(k):
        for dw in range(k):
            off = dh * wp + dw
            xs = xv[:, off:off + hwp]                 # [cp, hwp] bf16
            acc = acc + jnp.dot(w_ref[dh * k + dw], xs,
                                preferred_element_type=jnp.float32)
    acc = acc + b_ref[...]                            # + bias
    y_ref[...] = acc

    valid = acc * mask_ref[...]                       # zero out pad columns
    sum_ref[...] += jnp.sum(valid, axis=1, keepdims=True)
    ssq_ref[...] += jnp.sum(valid * valid, axis=1, keepdims=True)


def _bn_prelu_kernel(y_ref, sum_ref, ssq_ref, gamma_ref, beta_ref, alpha_ref,
                     out_ref, *, inv_count):
    """Pass 2 of conv1: y -> BatchNorm(train) -> PReLU (single shared alpha)."""
    mean = sum_ref[...] * inv_count                   # [cop, 1]
    var = jnp.maximum(ssq_ref[...] * inv_count - mean * mean, 0.0)
    scale = gamma_ref[...] * jax.lax.rsqrt(var + BN_EPS)
    shift = beta_ref[...] - mean * scale
    z = y_ref[...] * scale + shift
    alpha = alpha_ref[0, 0]                           # scalar in SMEM
    out_ref[...] = jnp.where(z >= 0.0, z, alpha * z)


def _bn_add_relu_kernel(y_ref, res_ref, sum_ref, ssq_ref, gamma_ref, beta_ref,
                        out_ref, *, inv_count):
    """Pass 2 of conv2: y -> BatchNorm(train) -> + residual -> ReLU."""
    mean = sum_ref[...] * inv_count
    var = jnp.maximum(ssq_ref[...] * inv_count - mean * mean, 0.0)
    scale = gamma_ref[...] * jax.lax.rsqrt(var + BN_EPS)
    shift = beta_ref[...] - mean * scale
    z = y_ref[...] * scale + shift
    out_ref[...] = jnp.maximum(res_ref[...] + z, 0.0)


# --------------------------- pallas_call wrappers ----------------------------


def _conv_bias_stats(x_flat, w_taps, bias, mask, *, n, k, cp, cop, wp, hwp, lp):
    kern = functools.partial(_conv_bias_stats_kernel,
                             k=k, cp=cp, cop=cop, wp=wp, hwp=hwp)
    flops = 2 * n * k * k * cp * cop * hwp
    bytes_accessed = (n * cp * lp * 2 + k * k * cop * cp * 2
                      + n * cop * hwp * 4 + 4 * cop * 4)
    return pl.pallas_call(
        kern,
        grid=(n,),
        in_specs=[
            pl.BlockSpec((None, cp, lp), lambda i: (i, 0, 0)),
            pl.BlockSpec((k * k, cop, cp), lambda i: (0, 0, 0)),
            pl.BlockSpec((cop, 1), lambda i: (0, 0)),
            pl.BlockSpec((1, hwp), lambda i: (0, 0)),
        ],
        out_specs=(
            pl.BlockSpec((None, cop, hwp), lambda i: (i, 0, 0)),
            pl.BlockSpec((cop, 1), lambda i: (0, 0)),
            pl.BlockSpec((cop, 1), lambda i: (0, 0)),
        ),
        out_shape=(
            jax.ShapeDtypeStruct((n, cop, hwp), jnp.float32),
            jax.ShapeDtypeStruct((cop, 1), jnp.float32),
            jax.ShapeDtypeStruct((cop, 1), jnp.float32),
        ),
        compiler_params=pltpu.CompilerParams(
            # sum/ssq accumulate across the batch axis -> keep it sequential.
            dimension_semantics=("arbitrary",),
            vmem_limit_bytes=32 * 1024 * 1024,
        ),
        cost_estimate=pl.CostEstimate(flops=flops, transcendentals=0,
                                      bytes_accessed=bytes_accessed),
    )(x_flat, w_taps, bias, mask)


def _bn_prelu(y, s, q, gamma, beta, alpha, *, n, cop, hwp, inv_count):
    kern = functools.partial(_bn_prelu_kernel, inv_count=inv_count)
    small = pl.BlockSpec((cop, 1), lambda i: (0, 0))
    big = pl.BlockSpec((None, cop, hwp), lambda i: (i, 0, 0))
    return pl.pallas_call(
        kern,
        grid=(n,),
        in_specs=[big, small, small, small, small,
                  pl.BlockSpec(memory_space=pltpu.MemorySpace.SMEM)],
        out_specs=pl.BlockSpec((None, cop, hwp), lambda i: (i, 0, 0)),
        out_shape=jax.ShapeDtypeStruct((n, cop, hwp), jnp.float32),
        compiler_params=pltpu.CompilerParams(
            dimension_semantics=("parallel",),
            vmem_limit_bytes=32 * 1024 * 1024,
        ),
        cost_estimate=pl.CostEstimate(flops=8 * n * cop * hwp,
                                      transcendentals=n * cop,
                                      bytes_accessed=2 * n * cop * hwp * 4),
    )(y, s, q, gamma, beta, alpha)


def _bn_add_relu(y, res, s, q, gamma, beta, *, n, cop, hwp, inv_count):
    kern = functools.partial(_bn_add_relu_kernel, inv_count=inv_count)
    small = pl.BlockSpec((cop, 1), lambda i: (0, 0))
    big = pl.BlockSpec((None, cop, hwp), lambda i: (i, 0, 0))
    return pl.pallas_call(
        kern,
        grid=(n,),
        in_specs=[big, big, small, small, small, small],
        out_specs=pl.BlockSpec((None, cop, hwp), lambda i: (i, 0, 0)),
        out_shape=jax.ShapeDtypeStruct((n, cop, hwp), jnp.float32),
        compiler_params=pltpu.CompilerParams(
            dimension_semantics=("parallel",),
            vmem_limit_bytes=32 * 1024 * 1024,
        ),
        cost_estimate=pl.CostEstimate(flops=8 * n * cop * hwp,
                                      transcendentals=n * cop,
                                      bytes_accessed=3 * n * cop * hwp * 4),
    )(y, res, s, q, gamma, beta)


# ---------------------------------- Glue -------------------------------------


def _flatten_padded_image(t_nchw, c_pad, pad, l_pad):
    """[N,C,H,W] f32 -> [N, c_pad, l_pad] bf16 (zero padded, row-major flat)."""
    n, c, h, w = t_nchw.shape
    t = jnp.pad(t_nchw, ((0, 0), (0, c_pad - c), (pad, pad), (pad, pad)))
    t = t.reshape(n, c_pad, (h + 2 * pad) * (w + 2 * pad))
    t = jnp.pad(t, ((0, 0), (0, 0), (0, l_pad - t.shape[-1])))
    return t.astype(jnp.bfloat16)


def _weight_taps(w, cop, cp):
    """PyTorch [Cout, Cin, k, k] -> [k*k, cop, cp] bf16 (zero-padded channels)."""
    co, ci, k, _ = w.shape
    t = jnp.transpose(w, (2, 3, 0, 1))                        # [k, k, Cout, Cin]
    t = jnp.pad(t, ((0, 0), (0, 0), (0, cop - co), (0, cp - ci)))
    return t.reshape(k * k, cop, cp).astype(jnp.bfloat16)


def _col(v, c_pad):
    return jnp.pad(v, (0, c_pad - v.shape[0])).reshape(c_pad, 1).astype(jnp.float32)


def init_resblock_params(key, in_channels, out_channels, kernel_size):
    k1, k2, k3, k4 = jax.random.split(key, 4)
    scale = 0.1
    return dict(
        w1=scale * jax.random.normal(
            k1, (out_channels, in_channels, kernel_size, kernel_size), jnp.float32),
        b1=scale * jax.random.normal(k2, (out_channels,), jnp.float32),
        gamma1=jnp.ones((out_channels,), jnp.float32),
        beta1=jnp.zeros((out_channels,), jnp.float32),
        prelu_a=jnp.full((1, 1), 0.25, jnp.float32),   # PyTorch PReLU default
        # NOTE: matches the PyTorch module (conv2 declared with in_channels);
        # the module itself only works when in_channels == out_channels.
        w2=scale * jax.random.normal(
            k3, (out_channels, in_channels, kernel_size, kernel_size), jnp.float32),
        b2=scale * jax.random.normal(k4, (out_channels,), jnp.float32),
        gamma2=jnp.ones((out_channels,), jnp.float32),
        beta2=jnp.zeros((out_channels,), jnp.float32),
    )


def resblock_forward(params, x_nchw, kernel_size):
    """ResBlock forward.  Input/output: NCHW float32 (matches PyTorch)."""
    n, c, h, w = x_nchw.shape
    cout = params["w1"].shape[0]
    assert c == cout, "ResBlock needs in_channels == out_channels (residual/conv2)."
    k = kernel_size
    p = k // 2
    hp, wp = h + 2 * p, w + 2 * p
    cp = _round_up(c, 8)
    cop = _round_up(cout, 8)
    hwp = h * wp                                   # wide flat output length
    lp = _round_up(hp * wp + (k - 1), 128)         # flat padded-input length
    inv_count = 1.0 / float(n * h * w)

    x = x_nchw.astype(jnp.float32)

    # 1.0 on columns whose flat position corresponds to a real pixel (w < W).
    cols = jnp.arange(hwp, dtype=jnp.int32) % wp
    mask = (cols < w).astype(jnp.float32).reshape(1, hwp)

    # ---- conv1 -> BN -> PReLU ----
    x1 = _flatten_padded_image(x, cp, p, lp)
    y1, s1, q1 = _conv_bias_stats(
        x1, _weight_taps(params["w1"], cop, cp), _col(params["b1"], cop), mask,
        n=n, k=k, cp=cp, cop=cop, wp=wp, hwp=hwp, lp=lp)
    h1 = _bn_prelu(y1, s1, q1, _col(params["gamma1"], cop),
                   _col(params["beta1"], cop),
                   params["prelu_a"].astype(jnp.float32),
                   n=n, cop=cop, hwp=hwp, inv_count=inv_count)

    # ---- conv2 -> BN ----
    h1_img = h1.reshape(n, cop, h, wp)[:, :, :, :w]        # drop pad columns
    x2 = _flatten_padded_image(h1_img, cop, p, lp)
    y2, s2, q2 = _conv_bias_stats(
        x2, _weight_taps(params["w2"], cop, cop), _col(params["b2"], cop), mask,
        n=n, k=k, cp=cop, cop=cop, wp=wp, hwp=hwp, lp=lp)

    # ---- + residual -> ReLU ----
    res = jnp.pad(x, ((0, 0), (0, cop - c), (0, 0), (0, wp - w)))
    res = res.reshape(n, cop, hwp)
    out_wide = _bn_add_relu(y2, res, s2, q2, _col(params["gamma2"], cop),
                            _col(params["beta2"], cop),
                            n=n, cop=cop, hwp=hwp, inv_count=inv_count)

    out = out_wide.reshape(n, cop, h, wp)[:, :cout, :, :w]
    return out


# ------------------------- pure-JAX reference check --------------------------


def _reference_forward(params, x, k):
    p = k // 2

    def conv(t, wt, b):
        y = jax.lax.conv_general_dilated(
            t, wt, window_strides=(1, 1), padding=[(p, p), (p, p)],
            dimension_numbers=("NCHW", "OIHW", "NCHW"))
        return y + b.reshape(1, -1, 1, 1)

    def bn(y, gamma, beta):
        mean = jnp.mean(y, axis=(0, 2, 3), keepdims=True)
        var = jnp.mean((y - mean) ** 2, axis=(0, 2, 3), keepdims=True)
        yh = (y - mean) * jax.lax.rsqrt(var + BN_EPS)
        return gamma.reshape(1, -1, 1, 1) * yh + beta.reshape(1, -1, 1, 1)

    h1 = bn(conv(x, params["w1"], params["b1"]), params["gamma1"], params["beta1"])
    a = params["prelu_a"].reshape(())
    h1 = jnp.where(h1 >= 0, h1, a * h1)
    r = bn(conv(h1, params["w2"], params["b2"]), params["gamma2"], params["beta2"])
    return jnp.maximum(x + r, 0.0)


# ---------------------------------- Main --------------------------------------

if __name__ == "__main__":
    N, C, H, W = 2, 4, 16, 16
    K = 3

    key = jax.random.PRNGKey(0)
    kx, kp = jax.random.split(key)
    x = jax.random.normal(kx, (N, C, H, W), jnp.float32)
    params = init_resblock_params(kp, C, C, K)

    fwd = jax.jit(functools.partial(resblock_forward, kernel_size=K))
    out = jax.block_until_ready(fwd(params, x))
    assert out.shape == (N, C, H, W), out.shape

    ref = _reference_forward(params, x, K)
    err = float(jnp.max(jnp.abs(out - ref)))
    assert err < 0.1, f"max abs error vs reference too large: {err}"
    print("KERNEL_OK")
</pallas_src>

<mosaic_0001>
module attributes {stable_mosaic.version = 11 : i64} {
  func.func @_bn_prelu_kernel(%arg0: i32, %arg1: memref<1x8x288xf32, #tpu.memory_space<vmem>>, %arg2: memref<8x1xf32, #tpu.memory_space<vmem>>, %arg3: memref<8x1xf32, #tpu.memory_space<vmem>>, %arg4: memref<8x1xf32, #tpu.memory_space<vmem>>, %arg5: memref<8x1xf32, #tpu.memory_space<vmem>>, %arg6: memref<1x1xf32, #tpu.memory_space<smem>>, %arg7: memref<1x8x288xf32, #tpu.memory_space<vmem>>) attributes {dimension_semantics = [#tpu.dimension_semantics<parallel>], iteration_bounds = array<i64: 2>, scalar_prefetch = 0 : i64, scratch_operands = 0 : i64, tpu.core_type = #tpu.core_type<tc>, window_params = [{transform_indices = @transform_0, window_bounds = array<i64: 1, 8, 288>}, {pipeline_mode = #tpu.pipeline_mode<synchronous>, transform_indices = @transform_1, window_bounds = array<i64: 8, 1>}, {pipeline_mode = #tpu.pipeline_mode<synchronous>, transform_indices = @transform_2, window_bounds = array<i64: 8, 1>}, {pipeline_mode = #tpu.pipeline_mode<synchronous>, transform_indices = @transform_3, window_bounds = array<i64: 8, 1>}, {pipeline_mode = #tpu.pipeline_mode<synchronous>, transform_indices = @transform_4, window_bounds = array<i64: 8, 1>}, {transform_indices = @transform_5, window_bounds = array<i64: 1, 1>}, {transform_indices = @transform_6, window_bounds = array<i64: 1, 8, 288>}]} {
    %c0 = arith.constant 0 : index
    %c0_0 = arith.constant 0 : index
    %0 = vector.load %arg2[%c0, %c0_0] : memref<8x1xf32, #tpu.memory_space<vmem>>, vector<8x1xf32>
    %cst = arith.constant 0.001953125 : f32
    %1 = vector.broadcast %cst : f32 to vector<8x1xf32>
    %2 = arith.mulf %0, %1 : vector<8x1xf32>
    %c0_1 = arith.constant 0 : index
    %c0_2 = arith.constant 0 : index
    %3 = vector.load %arg3[%c0_1, %c0_2] : memref<8x1xf32, #tpu.memory_space<vmem>>, vector<8x1xf32>
    %cst_3 = arith.constant 0.001953125 : f32
    %4 = vector.broadcast %cst_3 : f32 to vector<8x1xf32>
    %5 = arith.mulf %3, %4 : vector<8x1xf32>
    %6 = arith.mulf %2, %2 : vector<8x1xf32>
    %7 = arith.subf %5, %6 : vector<8x1xf32>
    %cst_4 = arith.constant 0.000000e+00 : f32
    %8 = vector.broadcast %cst_4 : f32 to vector<8x1xf32>
    %9 = arith.maximumf %7, %8 : vector<8x1xf32>
    %c0_5 = arith.constant 0 : index
    %c0_6 = arith.constant 0 : index
    %10 = vector.load %arg4[%c0_5, %c0_6] : memref<8x1xf32, #tpu.memory_space<vmem>>, vector<8x1xf32>
    %cst_7 = arith.constant 9.99999974E-6 : f32
    %11 = vector.broadcast %cst_7 : f32 to vector<8x1xf32>
    %12 = arith.addf %9, %11 : vector<8x1xf32>
    %13 = math.rsqrt %12 : vector<8x1xf32>
    %14 = arith.mulf %10, %13 : vector<8x1xf32>
    %c0_8 = arith.constant 0 : index
    %c0_9 = arith.constant 0 : index
    %15 = vector.load %arg5[%c0_8, %c0_9] : memref<8x1xf32, #tpu.memory_space<vmem>>, vector<8x1xf32>
    %16 = arith.mulf %2, %14 : vector<8x1xf32>
    %17 = arith.subf %15, %16 : vector<8x1xf32>
    %c0_10 = arith.constant 0 : index
    %c0_11 = arith.constant 0 : index
    %c0_12 = arith.constant 0 : index
    %18 = vector.load %arg1[%c0_10, %c0_11, %c0_12] : memref<1x8x288xf32, #tpu.memory_space<vmem>>, vector<1x8x288xf32>
    %19 = vector.shape_cast %18 : vector<1x8x288xf32> to vector<8x288xf32>
    %20 = vector.broadcast %14 : vector<8x1xf32> to vector<8x288xf32>
    %21 = arith.mulf %19, %20 : vector<8x288xf32>
    %22 = vector.broadcast %17 : vector<8x1xf32> to vector<8x288xf32>
    %23 = arith.addf %21, %22 : vector<8x288xf32>
    %c0_13 = arith.constant 0 : index
    %c0_14 = arith.constant 0 : index
    %24 = memref.load %arg6[%c0_13, %c0_14] : memref<1x1xf32, #tpu.memory_space<smem>>
    %cst_15 = arith.constant 0.000000e+00 : f32
    %25 = vector.broadcast %cst_15 : f32 to vector<8x288xf32>
    %26 = arith.cmpf oge, %23, %25 : vector<8x288xf32>
    %27 = vector.broadcast %24 : f32 to vector<8x288xf32>
    %28 = arith.mulf %27, %23 : vector<8x288xf32>
    %29 = arith.select %26, %23, %28 : vector<8x288xi1>, vector<8x288xf32>
    %c0_16 = arith.constant 0 : index
    %c0_17 = arith.constant 0 : index
    %c0_18 = arith.constant 0 : index
    %30 = vector.load %arg7[%c0_16, %c0_17, %c0_18] : memref<1x8x288xf32, #tpu.memory_space<vmem>>, vector<1x8x288xf32>
    %31 = vector.shape_cast %30 : vector<1x8x288xf32> to vector<8x288xf32>
    %32 = vector.shape_cast %29 : vector<8x288xf32> to vector<1x8x288xf32>
    tpu.vector_store %arg7[%c0_16, %c0_17, %c0_18], %32 {strides = array<i32>} : memref<1x8x288xf32, #tpu.memory_space<vmem>>, vector<1x8x288xf32>,
    return
  }
  func.func @transform_0(%arg0: i32) -> (i32, i32, i32) {
    %c0_i32 = arith.constant 0 : i32
    %c0_i32_0 = arith.constant 0 : i32
    %c0_i32_1 = arith.constant 0 : i32
    return %arg0, %c0_i32, %c0_i32_0 : i32, i32, i32
  }
  func.func @transform_1(%arg0: i32) -> (i32, i32) {
    %c0_i32 = arith.constant 0 : i32
    %c0_i32_0 = arith.constant 0 : i32
    %c0_i32_1 = arith.constant 0 : i32
    return %c0_i32, %c0_i32_0 : i32, i32
  }
  func.func @transform_2(%arg0: i32) -> (i32, i32) {
    %c0_i32 = arith.constant 0 : i32
    %c0_i32_0 = arith.constant 0 : i32
    %c0_i32_1 = arith.constant 0 : i32
    return %c0_i32, %c0_i32_0 : i32, i32
  }
  func.func @transform_3(%arg0: i32) -> (i32, i32) {
    %c0_i32 = arith.constant 0 : i32
    %c0_i32_0 = arith.constant 0 : i32
    %c0_i32_1 = arith.constant 0 : i32
    return %c0_i32, %c0_i32_0 : i32, i32
  }
  func.func @transform_4(%arg0: i32) -> (i32, i32) {
    %c0_i32 = arith.constant 0 : i32
    %c0_i32_0 = arith.constant 0 : i32
    %c0_i32_1 = arith.constant 0 : i32
    return %c0_i32, %c0_i32_0 : i32, i32
  }
  func.func @transform_5(%arg0: i32) -> (i32, i32) {
    %c0_i32 = arith.constant 0 : i32
    %c0_i32_0 = arith.constant 0 : i32
    %c0_i32_1 = arith.constant 0 : i32
    return %c0_i32, %c0_i32_0 : i32, i32
  }
  func.func @transform_6(%arg0: i32) -> (i32, i32, i32) {
    %c0_i32 = arith.constant 0 : i32
    %c0_i32_0 = arith.constant 0 : i32
    %c0_i32_1 = arith.constant 0 : i32
    return %arg0, %c0_i32, %c0_i32_0 : i32, i32, i32
  }
}

module attributes {stable_mosaic.version = 11 : i64} {
  func.func @_conv_bias_stats_kernel(%arg0: i32, %arg1: memref<1x8x384xbf16, #tpu.memory_space<vmem>>, %arg2: memref<9x8x8xbf16, #tpu.memory_space<vmem>>, %arg3: memref<8x1xf32, #tpu.memory_space<vmem>>, %arg4: memref<1x288xf32, #tpu.memory_space<vmem>>, %arg5: memref<1x8x288xf32, #tpu.memory_space<vmem>>, %arg6: memref<8x1xf32, #tpu.memory_space<vmem>>, %arg7: memref<8x1xf32, #tpu.memory_space<vmem>>) attributes {dimension_semantics = [#tpu.dimension_semantics<arbitrary>], iteration_bounds = array<i64: 2>, scalar_prefetch = 0 : i64, scratch_operands = 0 : i64, tpu.core_type = #tpu.core_type<tc>, window_params = [{transform_indices = @transform_0, window_bounds = array<i64: 1, 8, 384>}, {pipeline_mode = #tpu.pipeline_mode<synchronous>, transform_indices = @transform_1, window_bounds = array<i64: 9, 8, 8>}, {pipeline_mode = #tpu.pipeline_mode<synchronous>, transform_indices = @transform_2, window_bounds = array<i64: 8, 1>}, {pipeline_mode = #tpu.pipeline_mode<synchronous>, transform_indices = @transform_3, window_bounds = array<i64: 1, 288>}, {transform_indices = @transform_4, window_bounds = array<i64: 1, 8, 288>}, {pipeline_mode = #tpu.pipeline_mode<synchronous>, transform_indices = @transform_5, window_bounds = array<i64: 8, 1>}, {pipeline_mode = #tpu.pipeline_mode<synchronous>, transform_indices = @transform_6, window_bounds = array<i64: 8, 1>}]} {
    %c0_i32 = arith.constant 0 : i32
    %0 = arith.cmpi eq, %arg0, %c0_i32 : i32
    %1 = arith.extui %0 : i1 to i32
    %c0_i32_0 = arith.constant 0 : i32
    %2 = arith.cmpi ne, %1, %c0_i32_0 : i32
    scf.if %2 {
      %cst_48 = arith.constant 0.000000e+00 : f32
      %71 = vector.broadcast %cst_48 : f32 to vector<8x1xf32>
      %c0_49 = arith.constant 0 : index
      %c0_50 = arith.constant 0 : index
      %72 = vector.load %arg6[%c0_49, %c0_50] : memref<8x1xf32, #tpu.memory_space<vmem>>, vector<8x1xf32>
      tpu.vector_store %arg6[%c0_49, %c0_50], %71 {strides = array<i32>} : memref<8x1xf32, #tpu.memory_space<vmem>>, vector<8x1xf32>,
      %cst_51 = arith.constant 0.000000e+00 : f32
      %73 = vector.broadcast %cst_51 : f32 to vector<8x1xf32>
      %c0_52 = arith.constant 0 : index
      %c0_53 = arith.constant 0 : index
      %74 = vector.load %arg7[%c0_52, %c0_53] : memref<8x1xf32, #tpu.memory_space<vmem>>, vector<8x1xf32>
      tpu.vector_store %arg7[%c0_52, %c0_53], %73 {strides = array<i32>} : memref<8x1xf32, #tpu.memory_space<vmem>>, vector<8x1xf32>,
    } else {
    }
    %c0 = arith.constant 0 : index
    %c0_1 = arith.constant 0 : index
    %c0_2 = arith.constant 0 : index
    %3 = vector.load %arg1[%c0, %c0_1, %c0_2] : memref<1x8x384xbf16, #tpu.memory_space<vmem>>, vector<1x8x384xbf16>
    %4 = vector.shape_cast %3 : vector<1x8x384xbf16> to vector<8x384xbf16>
    %cst = arith.constant 0.000000e+00 : f32
    %5 = vector.broadcast %cst : f32 to vector<8x288xf32>
    %6 = vector.extract_strided_slice %4 {offsets = [0, 0], sizes = [8, 288], strides = [1, 1]} : vector<8x384xbf16> to vector<8x288xbf16>
    %c0_3 = arith.constant 0 : index
    %c0_4 = arith.constant 0 : index
    %c0_5 = arith.constant 0 : index
    %7 = vector.load %arg2[%c0_3, %c0_4, %c0_5] : memref<9x8x8xbf16, #tpu.memory_space<vmem>>, vector<1x8x8xbf16>
    %8 = vector.shape_cast %7 : vector<1x8x8xbf16> to vector<8x8xbf16>
    %cst_6 = arith.constant dense<0.000000e+00> : vector<8x288xf32>
    %9 = tpu.matmul %8, %6, %cst_6 {dimension_numbers = #tpu.dot_dimension_numbers<[1], [0], [0], [1], [0, 0, 1, 1], [], []>} : vector<8x8xbf16>, vector<8x288xbf16>, vector<8x288xf32> -> vector<8x288xf32>
    %10 = arith.addf %5, %9 : vector<8x288xf32>
    %11 = vector.extract_strided_slice %4 {offsets = [0, 1], sizes = [8, 288], strides = [1, 1]} : vector<8x384xbf16> to vector<8x288xbf16>
    %c1 = arith.constant 1 : index
    %c0_7 = arith.constant 0 : index
    %c0_8 = arith.constant 0 : index
    %12 = vector.load %arg2[%c1, %c0_7, %c0_8] : memref<9x8x8xbf16, #tpu.memory_space<vmem>>, vector<1x8x8xbf16>
    %13 = vector.shape_cast %12 : vector<1x8x8xbf16> to vector<8x8xbf16>
    %cst_9 = arith.constant dense<0.000000e+00> : vector<8x288xf32>
    %14 = tpu.matmul %13, %11, %cst_9 {dimension_numbers = #tpu.dot_dimension_numbers<[1], [0], [0], [1], [0, 0, 1, 1], [], []>} : vector<8x8xbf16>, vector<8x288xbf16>, vector<8x288xf32> -> vector<8x288xf32>
    %15 = arith.addf %10, %14 : vector<8x288xf32>
    %16 = vector.extract_strided_slice %4 {offsets = [0, 2], sizes = [8, 288], strides = [1, 1]} : vector<8x384xbf16> to vector<8x288xbf16>
    %c2 = arith.constant 2 : index
    %c0_10 = arith.constant 0 : index
    %c0_11 = arith.constant 0 : index
    %17 = vector.load %arg2[%c2, %c0_10, %c0_11] : memref<9x8x8xbf16, #tpu.memory_space<vmem>>, vector<1x8x8xbf16>
    %18 = vector.shape_cast %17 : vector<1x8x8xbf16> to vector<8x8xbf16>
    %cst_12 = arith.constant dense<0.000000e+00> : vector<8x288xf32>
    %19 = tpu.matmul %18, %16, %cst_12 {dimension_numbers = #tpu.dot_dimension_numbers<[1], [0], [0], [1], [0, 0, 1, 1], [], []>} : vector<8x8xbf16>, vector<8x288xbf16>, vector<8x288xf32> -> vector<8x288xf32>
    %20 = arith.addf %15, %19 : vector<8x288xf32>
    %21 = vector.extract_strided_slice %4 {offsets = [0, 18], sizes = [8, 288], strides = [1, 1]} : vector<8x384xbf16> to vector<8x288xbf16>
    %c3 = arith.constant 3 : index
    %c0_13 = arith.constant 0 : index
    %c0_14 = arith.constant 0 : index
    %22 = vector.load %arg2[%c3, %c0_13, %c0_14] : memref<9x8x8xbf16, #tpu.memory_space<vmem>>, vector<1x8x8xbf16>
    %23 = vector.shape_cast %22 : vector<1x8x8xbf16> to vector<8x8xbf16>
    %cst_15 = arith.constant dense<0.000000e+00> : vector<8x288xf32>
    %24 = tpu.matmul %23, %21, %cst_15 {dimension_numbers = #tpu.dot_dimension_numbers<[1], [0], [0], [1], [0, 0, 1, 1], [], []>} : vector<8x8xbf16>, vector<8x288xbf16>, vector<8x288xf32> -> vector<8x288xf32>
    %25 = arith.addf %20, %24 : vector<8x288xf32>
    %26 = vector.extract_strided_slice %4 {offsets = [0, 19], sizes = [8, 288], strides = [1, 1]} : vector<8x384xbf16> to vector<8x288xbf16>
    %c4 = arith.constant 4 : index
    %c0_16 = arith.constant 0 : index
    %c0_17 = arith.constant 0 : index
    %27 = vector.load %arg2[%c4, %c0_16, %c0_17] : memref<9x8x8xbf16, #tpu.memory_space<vmem>>, vector<1x8x8xbf16>
    %28 = vector.shape_cast %27 : vector<1x8x8xbf16> to vector<8x8xbf16>
    %cst_18 = arith.constant dense<0.000000e+00> : vector<8x288xf32>
    %29 = tpu.matmul %28, %26, %cst_18 {dimension_numbers = #tpu.dot_dimension_numbers<[1], [0], [0], [1], [0, 0, 1, 1], [], []>} : vector<8x8xbf16>, vector<8x288xbf16>, vector<8x288xf32> -> vector<8x288xf32>
    %30 = arith.addf %25, %29 : vector<8x288xf32>
    %31 = vector.extract_strided_slice %4 {offsets = [0, 20], sizes = [8, 288], strides = [1, 1]} : vector<8x384xbf16> to vector<8x288xbf16>
    %c5 = arith.constant 5 : index
    %c0_19 = arith.constant 0 : index
    %c0_20 = arith.constant 0 : index
    %32 = vector.load %arg2[%c5, %c0_19, %c0_20] : memref<9x8x8xbf16, #tpu.memory_space<vmem>>, vector<1x8x8xbf16>
    %33 = vector.shape_cast %32 : vector<1x8x8xbf16> to vector<8x8xbf16>
    %cst_21 = arith.constant dense<0.000000e+00> : vector<8x288xf32>
    %34 = tpu.matmul %33, %31, %cst_21 {dimension_numbers = #tpu.dot_dimension_numbers<[1], [0], [0], [1], [0, 0, 1, 1], [], []>} : vector<8x8xbf16>, vector<8x288xbf16>, vector<8x288xf32> -> vector<8x288xf32>
    %35 = arith.addf %30, %34 : vector<8x288xf32>
    %36 = vector.extract_strided_slice %4 {offsets = [0, 36], sizes = [8, 288], strides = [1, 1]} : vector<8x384xbf16> to vector<8x288xbf16>
    %c6 = arith.constant 6 : index
    %c0_22 = arith.constant 0 : index
    %c0_23 = arith.constant 0 : index
    %37 = vector.load %arg2[%c6, %c0_22, %c0_23] : memref<9x8x8xbf16, #tpu.memory_space<vmem>>, vector<1x8x8xbf16>
    %38 = vector.shape_cast %37 : vector<1x8x8xbf16> to vector<8x8xbf16>
    %cst_24 = arith.constant dense<0.000000e+00> : vector<8x288xf32>
    %39 = tpu.matmul %38, %36, %cst_24 {dimension_numbers = #tpu.dot_dimension_numbers<[1], [0], [0], [1], [0, 0, 1, 1], [], []>} : vector<8x8xbf16>, vector<8x288xbf16>, vector<8x288xf32> -> vector<8x288xf32>
    %40 = arith.addf %35, %39 : vector<8x288xf32>
    %41 = vector.extract_strided_slice %4 {offsets = [0, 37], sizes = [8, 288], strides = [1, 1]} : vector<8x384xbf16> to vector<8x288xbf16>
    %c7 = arith.constant 7 : index
    %c0_25 = arith.constant 0 : index
    %c0_26 = arith.constant 0 : index
    %42 = vector.load %arg2[%c7, %c0_25, %c0_26] : memref<9x8x8xbf16, #tpu.memory_space<vmem>>, vector<1x8x8xbf16>
    %43 = vector.shape_cast %42 : vector<1x8x8xbf16> to vector<8x8xbf16>
    %cst_27 = arith.constant dense<0.000000e+00> : vector<8x288xf32>
    %44 = tpu.matmul %43, %41, %cst_27 {dimension_numbers = #tpu.dot_dimension_numbers<[1], [0], [0], [1], [0, 0, 1, 1], [], []>} : vector<8x8xbf16>, vector<8x288xbf16>, vector<8x288xf32> -> vector<8x288xf32>
    %45 = arith.addf %40, %44 : vector<8x288xf32>
    %46 = vector.extract_strided_slice %4 {offsets = [0, 38], sizes = [8, 288], strides = [1, 1]} : vector<8x384xbf16> to vector<8x288xbf16>
    %c8 = arith.constant 8 : index
    %c0_28 = arith.constant 0 : index
    %c0_29 = arith.constant 0 : index
    %47 = vector.load %arg2[%c8, %c0_28, %c0_29] : memref<9x8x8xbf16, #tpu.memory_space<vmem>>, vector<1x8x8xbf16>
    %48 = vector.shape_cast %47 : vector<1x8x8xbf16> to vector<8x8xbf16>
    %cst_30 = arith.constant dense<0.000000e+00> : vector<8x288xf32>
    %49 = tpu.matmul %48, %46, %cst_30 {dimension_numbers = #tpu.dot_dimension_numbers<[1], [0], [0], [1], [0, 0, 1, 1], [], []>} : vector<8x8xbf16>, vector<8x288xbf16>, vector<8x288xf32> -> vector<8x288xf32>
    %50 = arith.addf %45, %49 : vector<8x288xf32>
    %c0_31 = arith.constant 0 : index
    %c0_32 = arith.constant 0 : index
    %51 = vector.load %arg3[%c0_31, %c0_32] : memref<8x1xf32, #tpu.memory_space<vmem>>, vector<8x1xf32>
    %52 = vector.broadcast %51 : vector<8x1xf32> to vector<8x288xf32>
    %53 = arith.addf %50, %52 : vector<8x288xf32>
    %c0_33 = arith.constant 0 : index
    %c0_34 = arith.constant 0 : index
    %c0_35 = arith.constant 0 : index
    %54 = vector.load %arg5[%c0_33, %c0_34, %c0_35] : memref<1x8x288xf32, #tpu.memory_space<vmem>>, vector<1x8x288xf32>
    %55 = vector.shape_cast %54 : vector<1x8x288xf32> to vector<8x288xf32>
    %56 = vector.shape_cast %53 : vector<8x288xf32> to vector<1x8x288xf32>
    tpu.vector_store %arg5[%c0_33, %c0_34, %c0_35], %56 {strides = array<i32>} : memref<1x8x288xf32, #tpu.memory_space<vmem>>, vector<1x8x288xf32>,
    %c0_36 = arith.constant 0 : index
    %c0_37 = arith.constant 0 : index
    %57 = vector.load %arg4[%c0_36, %c0_37] : memref<1x288xf32, #tpu.memory_space<vmem>>, vector<1x288xf32>
    %58 = vector.broadcast %57 : vector<1x288xf32> to vector<8x288xf32>
    %59 = arith.mulf %53, %58 : vector<8x288xf32>
    %c0_38 = arith.constant 0 : index
    %c0_39 = arith.constant 0 : index
    %60 = vector.load %arg6[%c0_38, %c0_39] : memref<8x1xf32, #tpu.memory_space<vmem>>, vector<8x1xf32>
    %cst_40 = arith.constant dense<0.000000e+00> : vector<8xf32>
    %61 = vector.multi_reduction <add>, %59, %cst_40 [1] : vector<8x288xf32> to vector<8xf32>
    %62 = vector.shape_cast %61 : vector<8xf32> to vector<8x1xf32>
    %63 = arith.addf %60, %62 : vector<8x1xf32>
    %c0_41 = arith.constant 0 : index
    %c0_42 = arith.constant 0 : index
    %64 = vector.load %arg6[%c0_41, %c0_42] : memref<8x1xf32, #tpu.memory_space<vmem>>, vector<8x1xf32>
    tpu.vector_store %arg6[%c0_41, %c0_42], %63 {strides = array<i32>} : memref<8x1xf32, #tpu.memory_space<vmem>>, vector<8x1xf32>,
    %c0_43 = arith.constant 0 : index
    %c0_44 = arith.constant 0 : index
    %65 = vector.load %arg7[%c0_43, %c0_44] : memref<8x1xf32, #tpu.memory_space<vmem>>, vector<8x1xf32>
    %66 = arith.mulf %59, %59 : vector<8x288xf32>
    %cst_45 = arith.constant dense<0.000000e+00> : vector<8xf32>
    %67 = vector.multi_reduction <add>, %66, %cst_45 [1] : vector<8x288xf32> to vector<8xf32>
    %68 = vector.shape_cast %67 : vector<8xf32> to vector<8x1xf32>
    %69 = arith.addf %65, %68 : vector<8x1xf32>
    %c0_46 = arith.constant 0 : index
    %c0_47 = arith.constant 0 : index
    %70 = vector.load %arg7[%c0_46, %c0_47] : memref<8x1xf32, #tpu.memory_space<vmem>>, vector<8x1xf32>
    tpu.vector_store %arg7[%c0_46, %c0_47], %69 {strides = array<i32>} : memref<8x1xf32, #tpu.memory_space<vmem>>, vector<8x1xf32>,
    return
  }
  func.func @transform_0(%arg0: i32) -> (i32, i32, i32) {
    %c0_i32 = arith.constant 0 : i32
    %c0_i32_0 = arith.constant 0 : i32
    %c0_i32_1 = arith.constant 0 : i32
    return %arg0, %c0_i32, %c0_i32_0 : i32, i32, i32
  }
  func.func @transform_1(%arg0: i32) -> (i32, i32, i32) {
    %c0_i32 = arith.constant 0 : i32
    %c0_i32_0 = arith.constant 0 : i32
    %c0_i32_1 = arith.constant 0 : i32
    %c0_i32_2 = arith.constant 0 : i32
    return %c0_i32, %c0_i32_0, %c0_i32_1 : i32, i32, i32
  }
  func.func @transform_2(%arg0: i32) -> (i32, i32) {
    %c0_i32 = arith.constant 0 : i32
    %c0_i32_0 = arith.constant 0 : i32
    %c0_i32_1 = arith.constant 0 : i32
    return %c0_i32, %c0_i32_0 : i32, i32
  }
  func.func @transform_3(%arg0: i32) -> (i32, i32) {
    %c0_i32 = arith.constant 0 : i32
    %c0_i32_0 = arith.constant 0 : i32
    %c0_i32_1 = arith.constant 0 : i32
    return %c0_i32, %c0_i32_0 : i32, i32
  }
  func.func @transform_4(%arg0: i32) -> (i32, i32, i32) {
    %c0_i32 = arith.constant 0 : i32
    %c0_i32_0 = arith.constant 0 : i32
    %c0_i32_1 = arith.constant 0 : i32
    return %arg0, %c0_i32, %c0_i32_0 : i32, i32, i32
  }
  func.func @transform_5(%arg0: i32) -> (i32, i32) {
    %c0_i32 = arith.constant 0 : i32
    %c0_i32_0 = arith.constant 0 : i32
    %c0_i32_1 = arith.constant 0 : i32
    return %c0_i32, %c0_i32_0 : i32, i32
  }
  func.func @transform_6(%arg0: i32) -> (i32, i32) {
    %c0_i32 = arith.constant 0 : i32
    %c0_i32_0 = arith.constant 0 : i32
    %c0_i32_1 = arith.constant 0 : i32
    return %c0_i32, %c0_i32_0 : i32, i32
  }
}

module attributes {stable_mosaic.version = 11 : i64} {
  func.func @_bn_add_relu_kernel(%arg0: i32, %arg1: memref<1x8x288xf32, #tpu.memory_space<vmem>>, %arg2: memref<1x8x288xf32, #tpu.memory_space<vmem>>, %arg3: memref<8x1xf32, #tpu.memory_space<vmem>>, %arg4: memref<8x1xf32, #tpu.memory_space<vmem>>, %arg5: memref<8x1xf32, #tpu.memory_space<vmem>>, %arg6: memref<8x1xf32, #tpu.memory_space<vmem>>, %arg7: memref<1x8x288xf32, #tpu.memory_space<vmem>>) attributes {dimension_semantics = [#tpu.dimension_semantics<parallel>], iteration_bounds = array<i64: 2>, scalar_prefetch = 0 : i64, scratch_operands = 0 : i64, tpu.core_type = #tpu.core_type<tc>, window_params = [{transform_indices = @transform_0, window_bounds = array<i64: 1, 8, 288>}, {transform_indices = @transform_1, window_bounds = array<i64: 1, 8, 288>}, {pipeline_mode = #tpu.pipeline_mode<synchronous>, transform_indices = @transform_2, window_bounds = array<i64: 8, 1>}, {pipeline_mode = #tpu.pipeline_mode<synchronous>, transform_indices = @transform_3, window_bounds = array<i64: 8, 1>}, {pipeline_mode = #tpu.pipeline_mode<synchronous>, transform_indices = @transform_4, window_bounds = array<i64: 8, 1>}, {pipeline_mode = #tpu.pipeline_mode<synchronous>, transform_indices = @transform_5, window_bounds = array<i64: 8, 1>}, {transform_indices = @transform_6, window_bounds = array<i64: 1, 8, 288>}]} {
    %c0 = arith.constant 0 : index
    %c0_0 = arith.constant 0 : index
    %0 = vector.load %arg3[%c0, %c0_0] : memref<8x1xf32, #tpu.memory_space<vmem>>, vector<8x1xf32>
    %cst = arith.constant 0.001953125 : f32
    %1 = vector.broadcast %cst : f32 to vector<8x1xf32>
    %2 = arith.mulf %0, %1 : vector<8x1xf32>
    %c0_1 = arith.constant 0 : index
    %c0_2 = arith.constant 0 : index
    %3 = vector.load %arg4[%c0_1, %c0_2] : memref<8x1xf32, #tpu.memory_space<vmem>>, vector<8x1xf32>
    %cst_3 = arith.constant 0.001953125 : f32
    %4 = vector.broadcast %cst_3 : f32 to vector<8x1xf32>
    %5 = arith.mulf %3, %4 : vector<8x1xf32>
    %6 = arith.mulf %2, %2 : vector<8x1xf32>
    %7 = arith.subf %5, %6 : vector<8x1xf32>
    %cst_4 = arith.constant 0.000000e+00 : f32
    %8 = vector.broadcast %cst_4 : f32 to vector<8x1xf32>
    %9 = arith.maximumf %7, %8 : vector<8x1xf32>
    %c0_5 = arith.constant 0 : index
    %c0_6 = arith.constant 0 : index
    %10 = vector.load %arg5[%c0_5, %c0_6] : memref<8x1xf32, #tpu.memory_space<vmem>>, vector<8x1xf32>
    %cst_7 = arith.constant 9.99999974E-6 : f32
    %11 = vector.broadcast %cst_7 : f32 to vector<8x1xf32>
    %12 = arith.addf %9, %11 : vector<8x1xf32>
    %13 = math.rsqrt %12 : vector<8x1xf32>
    %14 = arith.mulf %10, %13 : vector<8x1xf32>
    %c0_8 = arith.constant 0 : index
    %c0_9 = arith.constant 0 : index
    %15 = vector.load %arg6[%c0_8, %c0_9] : memref<8x1xf32, #tpu.memory_space<vmem>>, vector<8x1xf32>
    %16 = arith.mulf %2, %14 : vector<8x1xf32>
    %17 = arith.subf %15, %16 : vector<8x1xf32>
    %c0_10 = arith.constant 0 : index
    %c0_11 = arith.constant 0 : index
    %c0_12 = arith.constant 0 : index
    %18 = vector.load %arg1[%c0_10, %c0_11, %c0_12] : memref<1x8x288xf32, #tpu.memory_space<vmem>>, vector<1x8x288xf32>
    %19 = vector.shape_cast %18 : vector<1x8x288xf32> to vector<8x288xf32>
    %20 = vector.broadcast %14 : vector<8x1xf32> to vector<8x288xf32>
    %21 = arith.mulf %19, %20 : vector<8x288xf32>
    %22 = vector.broadcast %17 : vector<8x1xf32> to vector<8x288xf32>
    %23 = arith.addf %21, %22 : vector<8x288xf32>
    %c0_13 = arith.constant 0 : index
    %c0_14 = arith.constant 0 : index
    %c0_15 = arith.constant 0 : index
    %24 = vector.load %arg2[%c0_13, %c0_14, %c0_15] : memref<1x8x288xf32, #tpu.memory_space<vmem>>, vector<1x8x288xf32>
    %25 = vector.shape_cast %24 : vector<1x8x288xf32> to vector<8x288xf32>
    %26 = arith.addf %25, %23 : vector<8x288xf32>
    %cst_16 = arith.constant 0.000000e+00 : f32
    %27 = vector.broadcast %cst_16 : f32 to vector<8x288xf32>
    %28 = arith.maximumf %26, %27 : vector<8x288xf32>
    %c0_17 = arith.constant 0 : index
    %c0_18 = arith.constant 0 : index
    %c0_19 = arith.constant 0 : index
    %29 = vector.load %arg7[%c0_17, %c0_18, %c0_19] : memref<1x8x288xf32, #tpu.memory_space<vmem>>, vector<1x8x288xf32>
    %30 = vector.shape_cast %29 : vector<1x8x288xf32> to vector<8x288xf32>
    %31 = vector.shape_cast %28 : vector<8x288xf32> to vector<1x8x288xf32>
    tpu.vector_store %arg7[%c0_17, %c0_18, %c0_19], %31 {strides = array<i32>} : memref<1x8x288xf32, #tpu.memory_space<vmem>>, vector<1x8x288xf32>,
    return
  }
  func.func @transform_0(%arg0: i32) -> (i32, i32, i32) {
    %c0_i32 = arith.constant 0 : i32
    %c0_i32_0 = arith.constant 0 : i32
    %c0_i32_1 = arith.constant 0 : i32
    return %arg0, %c0_i32, %c0_i32_0 : i32, i32, i32
  }
  func.func @transform_1(%arg0: i32) -> (i32, i32, i32) {
    %c0_i32 = arith.constant 0 : i32
    %c0_i32_0 = arith.constant 0 : i32
    %c0_i32_1 = arith.constant 0 : i32
    return %arg0, %c0_i32, %c0_i32_0 : i32, i32, i32
  }
  func.func @transform_2(%arg0: i32) -> (i32, i32) {
    %c0_i32 = arith.constant 0 : i32
    %c0_i32_0 = arith.constant 0 : i32
    %c0_i32_1 = arith.constant 0 : i32
    return %c0_i32, %c0_i32_0 : i32, i32
  }
  func.func @transform_3(%arg0: i32) -> (i32, i32) {
    %c0_i32 = arith.constant 0 : i32
    %c0_i32_0 = arith.constant 0 : i32
    %c0_i32_1 = arith.constant 0 : i32
    return %c0_i32, %c0_i32_0 : i32, i32
  }
  func.func @transform_4(%arg0: i32) -> (i32, i32) {
    %c0_i32 = arith.constant 0 : i32
    %c0_i32_0 = arith.constant 0 : i32
    %c0_i32_1 = arith.constant 0 : i32
    return %c0_i32, %c0_i32_0 : i32, i32
  }
  func.func @transform_5(%arg0: i32) -> (i32, i32) {
    %c0_i32 = arith.constant 0 : i32
    %c0_i32_0 = arith.constant 0 : i32
    %c0_i32_1 = arith.constant 0 : i32
    return %c0_i32, %c0_i32_0 : i32, i32
  }
  func.func @transform_6(%arg0: i32) -> (i32, i32, i32) {
    %c0_i32 = arith.constant 0 : i32
    %c0_i32_0 = arith.constant 0 : i32
    %c0_i32_1 = arith.constant 0 : i32
    return %arg0, %c0_i32, %c0_i32_0 : i32, i32, i32
  }
}

</mosaic_0001>

<llo_original>
// kernel: resblock_forward.5
$region0: #{resblock_forward.5}
  #allocation0 [shape = 'u32[]', space=smem, size = 0x4, offset = 0x4, fixed_abs, tag = 'smem constant byte address 0x4 - core index']
  #allocation1 [shape = 'u32[144,128]{1,0:T(1,128)}', space=vmem, size = 0x12000, scoped, tag = 'internal scratch']
  #allocation2 [shape = 'f32[1,1]{1,0:T(1,128)S(6)}', space=smem, size = 0x200, scoped, tag = 'scoped memory for resblock_forward.5']
  %s0 = inlined_call_operand.vmem [shape: f32[2,8,288], index: 0, kind: input, shape index: {}]
  %s1 = inlined_call_operand.vmem [shape: f32[8,1], index: 1, kind: input, shape index: {}]
  %s2 = inlined_call_operand.vmem [shape: f32[8,1], index: 2, kind: input, shape index: {}]
  %s3 = inlined_call_operand.vmem [shape: f32[8,1], index: 3, kind: input, shape index: {}]
  %s4 = inlined_call_operand.vmem [shape: f32[8,1], index: 4, kind: input, shape index: {}]
  %s5 = inlined_call_operand.<no memory space> [shape: f32[1,1], index: 5, kind: input, shape index: {}]
  %s6 = inlined_call_operand.vmem [shape: f32[2,8,288], index: 6, kind: output, shape index: {}]
  %s7 = sld [smem:[#allocation0]]
  $region57: #{resblock_forward.5} parent=0
    _
  %s9 = ssub.s32 1, %s7
  %s10 = scalar_select 0, %s9, %s7
  %11 = sst [smem:[#allocation2]] %s5
  loop: start=0, step=1, limit=4
  $region2: #{resblock_forward.5} parent=0 // loop_pre_header
    _
  $region3: #{resblock_forward.5} parent=0 // loop_header
    %s13 = sphi 0, %s17
    %p14 = scmp.ge.s32.totalorder %s13, 4
    %s23 = sphi 0, %s25
    %s26 = sphi 0, %s23
    %s27 = sphi 0, %s26
    %s43 = sphi 0, %s27
    %s47 = sphi 0, %s47
    %s49 = sphi 0, %s47
    %s50 = sphi 0, %s49
    %s64 = sphi 0, %s50
    %s68 = sphi 0, %s68
    %s70 = sphi 0, %s68
    %s71 = sphi 0, %s70
    %s85 = sphi 0, %s71
    %s89 = sphi 0, %s89
    %s91 = sphi 0, %s89
    %s92 = sphi 0, %s91
    %s106 = sphi 0, %s92
    %s110 = sphi 0, %s110
    %s112 = sphi 0, %s110
    %s113 = sphi 0, %s112
    %s127 = sphi 0, %s113
    %s131 = sphi 0, %s131
    %s133 = sphi 0, %s131
    %s134 = sphi 0, %s133
    %s148 = sphi 0, %s134
    %s154 = sphi 0, %s156
    %s157 = sphi 0, %s154
    %s158 = sphi 0, %s157
    %s174 = sphi 0, %s158
  $region4: #{resblock_forward.5} parent=0 // loop_header_branch
    %16 = sbr.rel (%p14) target = $region8
  $region5: #{resblock_forward.5} parent=0 // loop_body
    %s18 = ssub.s32 %s13, 1
    %s19 = ssub.s32 %s13, 2
    %s20 = sadd.s32 %s13, 1
    %s21 = ssub.s32 %s13, %s20
    %p22 = scmp.eq.s32.totalorder %s21, 0
    %s24 = sadd.s32 %s23, 1
    %s25 = scalar_select %p22, %s23, %s24
    %p28 = pneg %p22
    %p29 = scmp.eq.s32.totalorder %s13, 1
    %p30 = por %p28, %p29
    %p31 = scmp.ne.s32.totalorder %s23, %s26
    %p32 = scmp.eq.s32.totalorder %s13, 0
    %p33 = por %p31, %p32
    %p34 = scmp.ne.s32.totalorder %s23, %s26
    %p35 = scmp.eq.s32.totalorder %s18, 1
    %p36 = por %p34, %p35
    %p37 = scmp.ne.s32.totalorder %s26, %s27
    %p38 = scmp.eq.s32.totalorder %s18, 0
    %p39 = por %p37, %p38
    %p40 = scmp.ne.s32.totalorder %s26, %s27
    %p41 = scmp.eq.s32.totalorder %s19, 1
    %p42 = por %p40, %p41
    %p44 = scmp.ne.s32.totalorder %s27, %s43
    %p45 = scmp.eq.s32.totalorder %s19, 0
    %p46 = por %p44, %p45
    %s48 = sadd.s32 %s47, 1
    %p51 = scmp.eq.s32.totalorder %s13, 1
    %p52 = scmp.ne.s32.totalorder %s47, %s49
    %p53 = scmp.eq.s32.totalorder %s13, 0
    %p54 = por %p52, %p53
    %p55 = scmp.ne.s32.totalorder %s47, %s49
    %p56 = scmp.eq.s32.totalorder %s18, 1
    %p57 = por %p55, %p56
    %p58 = scmp.ne.s32.totalorder %s49, %s50
    %p59 = scmp.eq.s32.totalorder %s18, 0
    %p60 = por %p58, %p59
    %p61 = scmp.ne.s32.totalorder %s49, %s50
    %p62 = scmp.eq.s32.totalorder %s19, 1
    %p63 = por %p61, %p62
    %p65 = scmp.ne.s32.totalorder %s50, %s64
    %p66 = scmp.eq.s32.totalorder %s19, 0
    %p67 = por %p65, %p66
    %s69 = sadd.s32 %s68, 1
    %p72 = scmp.eq.s32.totalorder %s13, 1
    %p73 = scmp.ne.s32.totalorder %s68, %s70
    %p74 = scmp.eq.s32.totalorder %s13, 0
    %p75 = por %p73, %p74
    %p76 = scmp.ne.s32.totalorder %s68, %s70
    %p77 = scmp.eq.s32.totalorder %s18, 1
    %p78 = por %p76, %p77
    %p79 = scmp.ne.s32.totalorder %s70, %s71
    %p80 = scmp.eq.s32.totalorder %s18, 0
    %p81 = por %p79, %p80
    %p82 = scmp.ne.s32.totalorder %s70, %s71
    %p83 = scmp.eq.s32.totalorder %s19, 1
    %p84 = por %p82, %p83
    %p86 = scmp.ne.s32.totalorder %s71, %s85
    %p87 = scmp.eq.s32.totalorder %s19, 0
    %p88 = por %p86, %p87
    %s90 = sadd.s32 %s89, 1
    %p93 = scmp.eq.s32.totalorder %s13, 1
    %p94 = scmp.ne.s32.totalorder %s89, %s91
    %p95 = scmp.eq.s32.totalorder %s13, 0
    %p96 = por %p94, %p95
    %p97 = scmp.ne.s32.totalorder %s89, %s91
    %p98 = scmp.eq.s32.totalorder %s18, 1
    %p99 = por %p97, %p98
    %p100 = scmp.ne.s32.totalorder %s91, %s92
    %p101 = scmp.eq.s32.totalorder %s18, 0
    %p102 = por %p100, %p101
    %p103 = scmp.ne.s32.totalorder %s91, %s92
    %p104 = scmp.eq.s32.totalorder %s19, 1
    %p105 = por %p103, %p104
    %p107 = scmp.ne.s32.totalorder %s92, %s106
    %p108 = scmp.eq.s32.totalorder %s19, 0
    %p109 = por %p107, %p108
    %s111 = sadd.s32 %s110, 1
    %p114 = scmp.eq.s32.totalorder %s13, 1
    %p115 = scmp.ne.s32.totalorder %s110, %s112
    %p116 = scmp.eq.s32.totalorder %s13, 0
    %p117 = por %p115, %p116
    %p118 = scmp.ne.s32.totalorder %s110, %s112
    %p119 = scmp.eq.s32.totalorder %s18, 1
    %p120 = por %p118, %p119
    %p121 = scmp.ne.s32.totalorder %s112, %s113
    %p122 = scmp.eq.s32.totalorder %s18, 0
    %p123 = por %p121, %p122
    %p124 = scmp.ne.s32.totalorder %s112, %s113
    %p125 = scmp.eq.s32.totalorder %s19, 1
    %p126 = por %p124, %p125
    %p128 = scmp.ne.s32.totalorder %s113, %s127
    %p129 = scmp.eq.s32.totalorder %s19, 0
    %p130 = por %p128, %p129
    %s132 = sadd.s32 %s131, 1
    %p135 = scmp.eq.s32.totalorder %s13, 1
    %p136 = scmp.ne.s32.totalorder %s131, %s133
    %p137 = scmp.eq.s32.totalorder %s13, 0
    %p138 = por %p136, %p137
    %p139 = scmp.ne.s32.totalorder %s131, %s133
    %p140 = scmp.eq.s32.totalorder %s18, 1
    %p141 = por %p139, %p140
    %p142 = scmp.ne.s32.totalorder %s133, %s134
    %p143 = scmp.eq.s32.totalorder %s18, 0
    %p144 = por %p142, %p143
    %p145 = scmp.ne.s32.totalorder %s133, %s134
    %p146 = scmp.eq.s32.totalorder %s19, 1
    %p147 = por %p145, %p146
    %p149 = scmp.ne.s32.totalorder %s134, %s148
    %p150 = scmp.eq.s32.totalorder %s19, 0
    %p151 = por %p149, %p150
    %s152 = ssub.s32 %s13, %s20
    %p153 = scmp.eq.s32.totalorder %s152, 0
    %s155 = sadd.s32 %s154, 1
    %s156 = scalar_select %p153, %s154, %s155
    %p159 = pneg %p153
    %p160 = scmp.eq.s32.totalorder %s13, 1
    %p161 = por %p159, %p160
    %p162 = scmp.ne.s32.totalorder %s154, %s157
    %p163 = scmp.eq.s32.totalorder %s13, 0
    %p164 = por %p162, %p163
    %p165 = scmp.ne.s32.totalorder %s154, %s157
    %p166 = scmp.eq.s32.totalorder %s18, 1
    %p167 = por %p165, %p166
    %p168 = scmp.ne.s32.totalorder %s157, %s158
    %p169 = scmp.eq.s32.totalorder %s18, 0
    %p170 = por %p168, %p169
    %p171 = scmp.ne.s32.totalorder %s157, %s158
    %p172 = scmp.eq.s32.totalorder %s19, 1
    %p173 = por %p171, %p172
    %p175 = scmp.ne.s32.totalorder %s158, %s174
    %p176 = scmp.eq.s32.totalorder %s19, 0
    %p177 = por %p175, %p176
    %p178 = scmp.le.s32.totalorder 1, %s13
    %p179 = scmp.lt.s32.totalorder %s13, 3
    %p180 = pnand %p178, %p179
    %p181 = pneg %p180
    // Predicated region
    $region9: #{resblock_forward.5} parent=5 // pred_check
      _
    $region10: #{resblock_forward.5} parent=5 // pred_check_branch
      %183 = sbr.rel (%p180) target = $region12
    $region11: #{resblock_forward.5} parent=5 // pred_region
      %s184 = ssub.s32 %s13, 1
      // Predicated region
      $region13: #{resblock_forward.5} parent=11 // pred_check
        %p185 = pneg %p60
      $region14: #{resblock_forward.5} parent=11 // pred_check_branch
        %187 = sbr.rel (%p185) target = $region16
      $region15: #{resblock_forward.5} parent=11 // pred_region
        _
      $region16: #{resblock_forward.5} parent=11 // pred_fallthru
        _
      // Predicated region
      $region17: #{resblock_forward.5} parent=11 // pred_check
        %p188 = pneg %p81
      $region18: #{resblock_forward.5} parent=11 // pred_check_branch
        %190 = sbr.rel (%p188) target = $region20
      $region19: #{resblock_forward.5} parent=11 // pred_region
        _
      $region20: #{resblock_forward.5} parent=11 // pred_fallthru
        _
      // Predicated region
      $region21: #{resblock_forward.5} parent=11 // pred_check
        %p191 = pneg %p102
      $region22: #{resblock_forward.5} parent=11 // pred_check_branch
        %193 = sbr.rel (%p191) target = $region24
      $region23: #{resblock_forward.5} parent=11 // pred_region
        _
      $region24: #{resblock_forward.5} parent=11 // pred_fallthru
        _
      // Predicated region
      $region25: #{resblock_forward.5} parent=11 // pred_check
        %p194 = pneg %p123
      $region26: #{resblock_forward.5} parent=11 // pred_check_branch
        %196 = sbr.rel (%p194) target = $region28
      $region27: #{resblock_forward.5} parent=11 // pred_region
        _
      $region28: #{resblock_forward.5} parent=11 // pred_fallthru
        _
      // Predicated region
      $region29: #{resblock_forward.5} parent=11 // pred_check
        %p197 = pneg %p144
      $region30: #{resblock_forward.5} parent=11 // pred_check_branch
        %199 = sbr.rel (%p197) target = $region32
      $region31: #{resblock_forward.5} parent=11 // pred_region
        _
      $region32: #{resblock_forward.5} parent=11 // pred_fallthru
        _
    $region12: #{resblock_forward.5} parent=5 // pred_fallthru
      _
    %p200 = scmp.lt.s32.totalorder %s13, 2
    // Predicated region
    $region33: #{resblock_forward.5} parent=5 // pred_check
      %p201 = pneg %p200
    $region34: #{resblock_forward.5} parent=5 // pred_check_branch
      %203 = sbr.rel (%p201) target = $region36
    $region35: #{resblock_forward.5} parent=5 // pred_region
      // Predicated region
      $region37: #{resblock_forward.5} parent=35 // pred_check
        %p204 = pneg %p33
      $region38: #{resblock_forward.5} parent=35 // pred_check_branch
        %206 = sbr.rel (%p204) target = $region40
      $region39: #{resblock_forward.5} parent=35 // pred_region
        %p207 = scmp.lt.s32.totalorder %s13, 1
        %s208 = scalar_select %p207, %s13, 1
        %s209 = smul.addr %s208, 3
        %s210 = smul.addr %s209, 8
        %s211 = scalar_lea.vmem %s0, %s210
      $region40: #{resblock_forward.5} parent=35 // pred_fallthru
        _
    $region36: #{resblock_forward.5} parent=5 // pred_fallthru
      _
    %p212 = scmp.le.s32.totalorder 1, %s13
    %p213 = scmp.lt.s32.totalorder %s13, 3
    %p214 = pnand %p212, %p213
    %p215 = pneg %p214
    // Predicated region
    $region41: #{resblock_forward.5} parent=5 // pred_check
      _
    $region42: #{resblock_forward.5} parent=5 // pred_check_branch
      %217 = sbr.rel (%p214) target = $region44
    $region43: #{resblock_forward.5} parent=5 // pred_region
      %s218 = ssub.s32 %s13, 1
      %p219 = scmp.lt.s32.totalorder %s18, 1
      %s220 = scalar_select %p219, %s18, 1
      %s221 = smul.addr %s220, 3
      %s222 = smul.addr %s221, 8
      %s223 = scalar_lea.vmem %s0, %s222
      %p224 = pneg %p39
      %p225 = pneg %p36
      %p226 = pneg %p60
      %p227 = pneg %p57
      %p228 = pneg %p81
      %p229 = pneg %p78
      %p230 = pneg %p102
      %p231 = pneg %p99
      %p232 = pneg %p123
      %p233 = pneg %p120
      %p234 = pneg %p144
      %p235 = pneg %p141
      %p236 = pneg %p170
      %p237 = pneg %p167
      %p238 = scmp.lt.s32.totalorder %s18, 1
      %s239 = scalar_select %p238, %s18, 1
      %s240 = smul.addr %s239, 3
      %s241 = smul.addr %s240, 8
      %s242 = scalar_lea.vmem %s6, %s241
      %p243 = scmp.lt.s32.totalorder %s18, 1
      %s244 = scalar_select %p243, %s18, 1
      %s245 = smul.addr %s244, 3
      %s246 = smul.addr %s245, 8
      %s247 = scalar_lea.vmem %s0, %s246
      %p248 = scmp.lt.s32.totalorder %s18, 1
      %s249 = scalar_select %p248, %s18, 1
      %s250 = smul.addr %s249, 3
      %s251 = smul.addr %s250, 8
      %s252 = scalar_lea.vmem %s6, %s251
      %v253 = vld [vmem:[%s1] sm:$0xff]
      %v254 = vmul.f32 %v253, 0.001953125
      %v255 = vld [vmem:[%s2] sm:$0xff]
      %v256 = vmul.f32 %v255, 0.001953125
      %v257 = vmul.f32 %v254, %v254
      %v258 = vsub.f32 %v256, %v257
      %v259 = vmax.f32 %v258, 0.0
      %v260 = vld [vmem:[%s3] sm:$0xff]
      %v261 = vadd.f32 %v259, 1e-05
      %v262 = vrsqrt.pop %v261
      %v263 = vmul.f32 %v260, %v262
      %v264 = vld [vmem:[%s4] sm:$0xff]
      %v265 = vmul.f32 %v254, %v263
      %v266 = vsub.f32 %v264, %v265
      %v267 = vld [vmem:[%s247] sm:$0xff]
      %v268 = vld [vmem:[%s247 + $0x8] sm:$0xff]
      %v269 = vld [vmem:[%s247 + $0x10] sm:$0xff]
      %271 = vset.pattern.permute.xlu0 0
      %272 = vperm.xlu0 %271, %v263
      %v273 = vpop.permute.xlu0 %272
      %v275 = vmul.f32 %v267, %v273
      %v276 = vmul.f32 %v268, %v273
      %v277 = vmul.f32 %v269, %v273
      %279 = vset.pattern.permute.xlu0 0
      %280 = vperm.xlu0 %279, %v266
      %v281 = vpop.permute.xlu0 %280
      %v283 = vadd.f32 %v275, %v281
      %v284 = vadd.f32 %v276, %v281
      %v285 = vadd.f32 %v277, %v281
      %s286 = sld [smem:[#allocation2]]
      %vm287 = vcmp.ge.f32.partialorder %v283, 0.0
      %vm288 = vcmp.ge.f32.partialorder %v284, 0.0
      %vm289 = vcmp.ge.f32.partialorder %v285, 0.0
      %v290 = vstv %s286
      %v291 = vmul.f32 %v290, %v283
      %v292 = vmul.f32 %v290, %v284
      %v293 = vmul.f32 %v290, %v285
      %v294 = vsel %vm287, %v283, %v291
      %v295 = vsel %vm288, %v284, %v292
      %v296 = vsel %vm289, %v285, %v293
      %297 = vst [vmem:[%s252] sm:$0xff] %v294
      %298 = vst [vmem:[%s252 + $0x8] sm:$0xff] %v295
      %vm299 = vcmask 261120
      %300 = vst.msk [vmem:[%s252 + $0x10] sm:$0xff] %vm299, %v296
      %p301 = scmp.lt.s32.totalorder %s18, 1
      %s302 = scalar_select %p301, %s18, 1
      %s303 = smul.addr %s302, 3
      %s304 = smul.addr %s303, 8
      %s305 = scalar_lea.vmem %s6, %s304
      // Predicated region
      $region45: #{resblock_forward.5} parent=43 // pred_check
        %p306 = pneg %p167
      $region46: #{resblock_forward.5} parent=43 // pred_check_branch
        %308 = sbr.rel (%p306) target = $region48
      $region47: #{resblock_forward.5} parent=43 // pred_region
        _
      $region48: #{resblock_forward.5} parent=43 // pred_fallthru
        _
    $region44: #{resblock_forward.5} parent=5 // pred_fallthru
      _
    %p309 = scmp.le.s32.totalorder 2, %s13
    // Predicated region
    $region49: #{resblock_forward.5} parent=5 // pred_check
      %p310 = pneg %p309
    $region50: #{resblock_forward.5} parent=5 // pred_check_branch
      %312 = sbr.rel (%p310) target = $region52
    $region51: #{resblock_forward.5} parent=5 // pred_region
      %s313 = ssub.s32 %s13, 2
      // Predicated region
      $region53: #{resblock_forward.5} parent=51 // pred_check
        %p314 = pneg %p173
      $region54: #{resblock_forward.5} parent=51 // pred_check_branch
        %316 = sbr.rel (%p314) target = $region56
      $region55: #{resblock_forward.5} parent=51 // pred_region
        %p317 = scmp.lt.s32.totalorder %s19, 1
        %s318 = scalar_select %p317, %s19, 1
        %s319 = smul.addr %s318, 3
        %s320 = smul.addr %s319, 8
        %s321 = scalar_lea.vmem %s6, %s320
      $region56: #{resblock_forward.5} parent=51 // pred_fallthru
        _
    $region52: #{resblock_forward.5} parent=5 // pred_fallthru
      _
  $region6: #{resblock_forward.5} parent=0 // loop_footer
    %s17 = sadd.s32 1, %s13
  $region7: #{resblock_forward.5} parent=0 // loop_footer_branch
    %12 = sbr.rel target = $region3
  $region8: #{resblock_forward.5} parent=0 // loop_exit
    _

// kernel: resblock_forward.4
$region0: #{resblock_forward.4}
  #allocation0 [shape = 'u32[]', space=smem, size = 0x4, offset = 0x4, fixed_abs, tag = 'smem constant byte address 0x4 - core index']
  #allocation1 [shape = 'u32[144,128]{1,0:T(1,128)}', space=vmem, size = 0x12000, scoped, tag = 'internal scratch']
  %s0 = inlined_call_operand.vmem [shape: bf16[2,8,384], index: 0, kind: input, shape index: {}]
  %s1 = inlined_call_operand.vmem [shape: bf16[9,8,8], index: 1, kind: input, shape index: {}]
  %s2 = inlined_call_operand.vmem [shape: f32[8,1], index: 2, kind: input, shape index: {}]
  %s3 = inlined_call_operand.vmem [shape: f32[1,288], index: 3, kind: input, shape index: {}]
  %s4 = inlined_call_operand.vmem [shape: f32[2,8,288], index: 4, kind: output, shape index: {0}]
  %s5 = inlined_call_operand.vmem [shape: f32[8,1], index: 5, kind: output, shape index: {1}]
  %s6 = inlined_call_operand.vmem [shape: f32[8,1], index: 6, kind: output, shape index: {2}]
  %7 = xla_tuple %s4, %s5, %s6
  %s8 = sld [smem:[#allocation0]]
  $region69: #{resblock_forward.4} parent=0
    _
  %s10 = ssub.s32 1, %s8
  %s11 = scalar_select 0, %s10, %s8
  loop: start=0, step=1, limit=4
  $region2: #{resblock_forward.4} parent=0 // loop_pre_header
    _
  $region3: #{resblock_forward.4} parent=0 // loop_header
    %s13 = sphi 0, %s17
    %p14 = scmp.ge.s32.totalorder %s13, 4
    %s23 = sphi 0, %s25
    %s26 = sphi 0, %s23
    %s27 = sphi 0, %s26
    %s43 = sphi 0, %s27
    %s47 = sphi 0, %s47
    %s49 = sphi 0, %s47
    %s50 = sphi 0, %s49
    %s64 = sphi 0, %s50
    %s68 = sphi 0, %s68
    %s70 = sphi 0, %s68
    %s71 = sphi 0, %s70
    %s85 = sphi 0, %s71
    %s89 = sphi 0, %s89
    %s91 = sphi 0, %s89
    %s92 = sphi 0, %s91
    %s106 = sphi 0, %s92
    %s112 = sphi 0, %s114
    %s115 = sphi 0, %s112
    %s116 = sphi 0, %s115
    %s132 = sphi 0, %s116
    %s136 = sphi 0, %s136
    %s138 = sphi 0, %s136
    %s139 = sphi 0, %s138
    %s153 = sphi 0, %s139
    %s157 = sphi 0, %s157
    %s159 = sphi 0, %s157
    %s160 = sphi 0, %s159
    %s174 = sphi 0, %s160
  $region4: #{resblock_forward.4} parent=0 // loop_header_branch
    %16 = sbr.rel (%p14) target = $region8
  $region5: #{resblock_forward.4} parent=0 // loop_body
    %s18 = ssub.s32 %s13, 1
    %s19 = ssub.s32 %s13, 2
    %s20 = sadd.s32 %s13, 1
    %s21 = ssub.s32 %s13, %s20
    %p22 = scmp.eq.s32.totalorder %s21, 0
    %s24 = sadd.s32 %s23, 1
    %s25 = scalar_select %p22, %s23, %s24
    %p28 = pneg %p22
    %p29 = scmp.eq.s32.totalorder %s13, 1
    %p30 = por %p28, %p29
    %p31 = scmp.ne.s32.totalorder %s23, %s26
    %p32 = scmp.eq.s32.totalorder %s13, 0
    %p33 = por %p31, %p32
    %p34 = scmp.ne.s32.totalorder %s23, %s26
    %p35 = scmp.eq.s32.totalorder %s18, 1
    %p36 = por %p34, %p35
    %p37 = scmp.ne.s32.totalorder %s26, %s27
    %p38 = scmp.eq.s32.totalorder %s18, 0
    %p39 = por %p37, %p38
    %p40 = scmp.ne.s32.totalorder %s26, %s27
    %p41 = scmp.eq.s32.totalorder %s19, 1
    %p42 = por %p40, %p41
    %p44 = scmp.ne.s32.totalorder %s27, %s43
    %p45 = scmp.eq.s32.totalorder %s19, 0
    %p46 = por %p44, %p45
    %s48 = sadd.s32 %s47, 1
    %p51 = scmp.eq.s32.totalorder %s13, 1
    %p52 = scmp.ne.s32.totalorder %s47, %s49
    %p53 = scmp.eq.s32.totalorder %s13, 0
    %p54 = por %p52, %p53
    %p55 = scmp.ne.s32.totalorder %s47, %s49
    %p56 = scmp.eq.s32.totalorder %s18, 1
    %p57 = por %p55, %p56
    %p58 = scmp.ne.s32.totalorder %s49, %s50
    %p59 = scmp.eq.s32.totalorder %s18, 0
    %p60 = por %p58, %p59
    %p61 = scmp.ne.s32.totalorder %s49, %s50
    %p62 = scmp.eq.s32.totalorder %s19, 1
    %p63 = por %p61, %p62
    %p65 = scmp.ne.s32.totalorder %s50, %s64
    %p66 = scmp.eq.s32.totalorder %s19, 0
    %p67 = por %p65, %p66
    %s69 = sadd.s32 %s68, 1
    %p72 = scmp.eq.s32.totalorder %s13, 1
    %p73 = scmp.ne.s32.totalorder %s68, %s70
    %p74 = scmp.eq.s32.totalorder %s13, 0
    %p75 = por %p73, %p74
    %p76 = scmp.ne.s32.totalorder %s68, %s70
    %p77 = scmp.eq.s32.totalorder %s18, 1
    %p78 = por %p76, %p77
    %p79 = scmp.ne.s32.totalorder %s70, %s71
    %p80 = scmp.eq.s32.totalorder %s18, 0
    %p81 = por %p79, %p80
    %p82 = scmp.ne.s32.totalorder %s70, %s71
    %p83 = scmp.eq.s32.totalorder %s19, 1
    %p84 = por %p82, %p83
    %p86 = scmp.ne.s32.totalorder %s71, %s85
    %p87 = scmp.eq.s32.totalorder %s19, 0
    %p88 = por %p86, %p87
    %s90 = sadd.s32 %s89, 1
    %p93 = scmp.eq.s32.totalorder %s13, 1
    %p94 = scmp.ne.s32.totalorder %s89, %s91
    %p95 = scmp.eq.s32.totalorder %s13, 0
    %p96 = por %p94, %p95
    %p97 = scmp.ne.s32.totalorder %s89, %s91
    %p98 = scmp.eq.s32.totalorder %s18, 1
    %p99 = por %p97, %p98
    %p100 = scmp.ne.s32.totalorder %s91, %s92
    %p101 = scmp.eq.s32.totalorder %s18, 0
    %p102 = por %p100, %p101
    %p103 = scmp.ne.s32.totalorder %s91, %s92
    %p104 = scmp.eq.s32.totalorder %s19, 1
    %p105 = por %p103, %p104
    %p107 = scmp.ne.s32.totalorder %s92, %s106
    %p108 = scmp.eq.s32.totalorder %s19, 0
    %p109 = por %p107, %p108
    %s110 = ssub.s32 %s13, %s20
    %p111 = scmp.eq.s32.totalorder %s110, 0
    %s113 = sadd.s32 %s112, 1
    %s114 = scalar_select %p111, %s112, %s113
    %p117 = pneg %p111
    %p118 = scmp.eq.s32.totalorder %s13, 1
    %p119 = por %p117, %p118
    %p120 = scmp.ne.s32.totalorder %s112, %s115
    %p121 = scmp.eq.s32.totalorder %s13, 0
    %p122 = por %p120, %p121
    %p123 = scmp.ne.s32.totalorder %s112, %s115
    %p124 = scmp.eq.s32.totalorder %s18, 1
    %p125 = por %p123, %p124
    %p126 = scmp.ne.s32.totalorder %s115, %s116
    %p127 = scmp.eq.s32.totalorder %s18, 0
    %p128 = por %p126, %p127
    %p129 = scmp.ne.s32.totalorder %s115, %s116
    %p130 = scmp.eq.s32.totalorder %s19, 1
    %p131 = por %p129, %p130
    %p133 = scmp.ne.s32.totalorder %s116, %s132
    %p134 = scmp.eq.s32.totalorder %s19, 0
    %p135 = por %p133, %p134
    %s137 = sadd.s32 %s136, 1
    %p140 = scmp.eq.s32.totalorder %s13, 1
    %p141 = scmp.ne.s32.totalorder %s136, %s138
    %p142 = scmp.eq.s32.totalorder %s13, 0
    %p143 = por %p141, %p142
    %p144 = scmp.ne.s32.totalorder %s136, %s138
    %p145 = scmp.eq.s32.totalorder %s18, 1
    %p146 = por %p144, %p145
    %p147 = scmp.ne.s32.totalorder %s138, %s139
    %p148 = scmp.eq.s32.totalorder %s18, 0
    %p149 = por %p147, %p148
    %p150 = scmp.ne.s32.totalorder %s138, %s139
    %p151 = scmp.eq.s32.totalorder %s19, 1
    %p152 = por %p150, %p151
    %p154 = scmp.ne.s32.totalorder %s139, %s153
    %p155 = scmp.eq.s32.totalorder %s19, 0
    %p156 = por %p154, %p155
    %s158 = sadd.s32 %s157, 1
    %p161 = scmp.eq.s32.totalorder %s13, 1
    %p162 = scmp.ne.s32.totalorder %s157, %s159
    %p163 = scmp.eq.s32.totalorder %s13, 0
    %p164 = por %p162, %p163
    %p165 = scmp.ne.s32.totalorder %s157, %s159
    %p166 = scmp.eq.s32.totalorder %s18, 1
    %p167 = por %p165, %p166
    %p168 = scmp.ne.s32.totalorder %s159, %s160
    %p169 = scmp.eq.s32.totalorder %s18, 0
    %p170 = por %p168, %p169
    %p171 = scmp.ne.s32.totalorder %s159, %s160
    %p172 = scmp.eq.s32.totalorder %s19, 1
    %p173 = por %p171, %p172
    %p175 = scmp.ne.s32.totalorder %s160, %s174
    %p176 = scmp.eq.s32.totalorder %s19, 0
    %p177 = por %p175, %p176
    %p178 = scmp.le.s32.totalorder 1, %s13
    %p179 = scmp.lt.s32.totalorder %s13, 3
    %p180 = pnand %p178, %p179
    %p181 = pneg %p180
    // Predicated region
    $region9: #{resblock_forward.4} parent=5 // pred_check
      _
    $region10: #{resblock_forward.4} parent=5 // pred_check_branch
      %183 = sbr.rel (%p180) target = $region12
    $region11: #{resblock_forward.4} parent=5 // pred_region
      %s184 = ssub.s32 %s13, 1
      // Predicated region
      $region13: #{resblock_forward.4} parent=11 // pred_check
        %p185 = pneg %p60
      $region14: #{resblock_forward.4} parent=11 // pred_check_branch
        %187 = sbr.rel (%p185) target = $region16
      $region15: #{resblock_forward.4} parent=11 // pred_region
        _
      $region16: #{resblock_forward.4} parent=11 // pred_fallthru
        _
      // Predicated region
      $region17: #{resblock_forward.4} parent=11 // pred_check
        %p188 = pneg %p81
      $region18: #{resblock_forward.4} parent=11 // pred_check_branch
        %190 = sbr.rel (%p188) target = $region20
      $region19: #{resblock_forward.4} parent=11 // pred_region
        _
      $region20: #{resblock_forward.4} parent=11 // pred_fallthru
        _
      // Predicated region
      $region21: #{resblock_forward.4} parent=11 // pred_check
        %p191 = pneg %p102
      $region22: #{resblock_forward.4} parent=11 // pred_check_branch
        %193 = sbr.rel (%p191) target = $region24
      $region23: #{resblock_forward.4} parent=11 // pred_region
        _
      $region24: #{resblock_forward.4} parent=11 // pred_fallthru
        _
    $region12: #{resblock_forward.4} parent=5 // pred_fallthru
      _
    %p194 = scmp.lt.s32.totalorder %s13, 2
    // Predicated region
    $region25: #{resblock_forward.4} parent=5 // pred_check
      %p195 = pneg %p194
    $region26: #{resblock_forward.4} parent=5 // pred_check_branch
      %197 = sbr.rel (%p195) target = $region28
    $region27: #{resblock_forward.4} parent=5 // pred_region
      // Predicated region
      $region29: #{resblock_forward.4} parent=27 // pred_check
        %p198 = pneg %p33
      $region30: #{resblock_forward.4} parent=27 // pred_check_branch
        %200 = sbr.rel (%p198) target = $region32
      $region31: #{resblock_forward.4} parent=27 // pred_region
        %p201 = scmp.lt.s32.totalorder %s13, 1
        %s202 = scalar_select %p201, %s13, 1
        %s203 = smul.addr %s202, 3
        %s204 = smul.addr %s203, 4
        %s205 = scalar_lea.vmem %s0, %s204
      $region32: #{resblock_forward.4} parent=27 // pred_fallthru
        _
    $region28: #{resblock_forward.4} parent=5 // pred_fallthru
      _
    %p206 = scmp.le.s32.totalorder 1, %s13
    %p207 = scmp.lt.s32.totalorder %s13, 3
    %p208 = pnand %p206, %p207
    %p209 = pneg %p208
    // Predicated region
    $region33: #{resblock_forward.4} parent=5 // pred_check
      _
    $region34: #{resblock_forward.4} parent=5 // pred_check_branch
      %211 = sbr.rel (%p208) target = $region36
    $region35: #{resblock_forward.4} parent=5 // pred_region
      %s212 = ssub.s32 %s13, 1
      %p213 = scmp.lt.s32.totalorder %s18, 1
      %s214 = scalar_select %p213, %s18, 1
      %s215 = smul.addr %s214, 3
      %s216 = smul.addr %s215, 4
      %s217 = scalar_lea.vmem %s0, %s216
      %p218 = pneg %p39
      %p219 = pneg %p36
      %p220 = pneg %p60
      %p221 = pneg %p57
      %p222 = pneg %p81
      %p223 = pneg %p78
      %p224 = pneg %p102
      %p225 = pneg %p99
      %p226 = pneg %p128
      %p227 = pneg %p125
      %p228 = scmp.lt.s32.totalorder %s18, 1
      %s229 = scalar_select %p228, %s18, 1
      %s230 = smul.addr %s229, 3
      %s231 = smul.addr %s230, 8
      %s232 = scalar_lea.vmem %s4, %s231
      %p233 = pneg %p149
      %p234 = pneg %p146
      %p235 = pneg %p170
      %p236 = pneg %p167
      %p237 = scmp.lt.s32.totalorder %s18, 1
      %s238 = scalar_select %p237, %s18, 1
      %s239 = smul.addr %s238, 3
      %s240 = smul.addr %s239, 4
      %s241 = scalar_lea.vmem %s0, %s240
      %p242 = scmp.lt.s32.totalorder %s18, 1
      %s243 = scalar_select %p242, %s18, 1
      %s244 = smul.addr %s243, 3
      %s245 = smul.addr %s244, 8
      %s246 = scalar_lea.vmem %s4, %s245
      %p248 = scmp.eq.s32.totalorder %s18, 0
      // Predicated region
      $region37: #{resblock_forward.4} parent=35 // pred_check
        %p249 = pneg %p248
      $region38: #{resblock_forward.4} parent=35 // pred_check_branch
        %251 = sbr.rel (%p249) target = $region40
      $region39: #{resblock_forward.4} parent=35 // pred_region
        %vm252 = vcmask 7168
        %253 = vst.msk [vmem:[%s5] sm:$0xff] %vm252, 0.0
        %254 = vst.msk [vmem:[%s6] sm:$0xff] %vm252, 0.0
      $region40: #{resblock_forward.4} parent=35 // pred_fallthru
        _
      %v255 = vld [vmem:[%s241] sm:$0xff]
      %v256 = vld [vmem:[%s241 + $0x8] sm:$0xf]
      %v257 = vld [vmem:[%s1] sm:$0xf]
      %s258 = scalar_lea.vmem %s1, 4
      %v259 = vld [vmem:[%s258] sm:$0xf]
      %v262 = vunpack.c.l.b16 %v255
      %v263 = vunpack.c.h.b16 %v255
      %v264 = vunpack.c.l.b16 %v256
      %v265 = vpack.c.b16 %v262, %v262
      %v266 = vpack.c.b16 %v263, %v263
      %v267 = vpack.c.b16 %v264, %v264
      %268 = vrot.lane.b32.xlu0 %v265, 127
      %v269 = vpop.permute.xlu0 %268
      %270 = vrot.lane.b32.xlu0 %v266, 127
      %v271 = vpop.permute.xlu0 %270
      %272 = vrot.lane.b32.xlu0 %v267, 127
      %v273 = vpop.permute.xlu0 %272
      %vm274 = vcmask 1039360
      %v275 = vsel %vm274, %v269, %v271
      %v276 = vsel %vm274, %v271, %v273
      %vm277 = vcmask 64512
      %v279 = vsel %vm277, %v259, 0
      %vm281 = vcmask 1043456
      %v283 = vsel %vm281, %v275, 0
      %v286 = vsel %vm281, %v276, 0
      %v289 = vsel %vm281, %v273, 0
      %291 = vmatprep.subr.bf16.mxu0 %v286
      %292 = vmatpush1.bf16.msra.mxu0 %v283
      %293 = vmatprep.subr.bf16.mxu0 0
      %294 = vmatpush1.bf16.msra.mxu0 0
      %295 = vmatprep.subr.bf16.mxu0 0
      %296 = vmatpush1.bf16.msra.mxu0 0
      %297 = vmatprep.subr.bf16.mxu0 0
      %298 = vmatpush1.bf16.msra.mxu0 0
      %299 = vmatprep.subr.bf16.mxu0 0
      %300 = vmatpush1.bf16.msra.mxu0 0
      %301 = vmatprep.subr.bf16.mxu0 0
      %302 = vmatpush1.bf16.msra.mxu0 0
      %303 = vmatprep.subr.bf16.mxu0 0
      %304 = vmatpush1.bf16.msra.mxu0 0
      %305 = vmatprep.subr.bf16.mxu0 0
      %306 = vmatpush1.bf16.msra.mxu0 0
      %307 = vmatprep.subr.bf16.mxu0 0
      %308 = vmatpush1.bf16.msra.mxu0 0
      %309 = vmatprep.subr.bf16.mxu0 0
      %310 = vmatpush1.bf16.msra.mxu0 0
      %311 = vmatprep.subr.bf16.mxu0 0
      %312 = vmatpush1.bf16.msra.mxu0 0
      %313 = vmatprep.subr.bf16.mxu0 0
      %314 = vmatpush1.bf16.msra.mxu0 0
      %315 = vmatprep.subr.bf16.mxu0 0
      %316 = vmatpush1.bf16.msra.mxu0 0
      %317 = vmatprep.subr.bf16.mxu0 0
      %318 = vmatpush1.bf16.msra.mxu0 0
      %319 = vmatprep.subr.bf16.mxu0 0
      %320 = vmatpush1.bf16.msra.mxu0 0
      %321 = vmatprep.subr.bf16.mxu0 0
      %322 = vmatpush1.bf16.msra.mxu0 0
      %323 = vmatprep.mubr.bf16.mxu0 0
      %324 = vmatmul.mubr.bf16.gmra.mrb[0].mxu0 %v279
      %v325 = vpop.f32.mrb[0].mxu0
      %v326 = vadd.f32 0.0, %v325
      %v327 = vpop.f32.mrb[0].mxu0
      %v328 = vadd.f32 0.0, %v327
      %v329 = vpop.f32.mrb[0].mxu0
      %v330 = vpop.f32.mrb[0].mxu0
      %331 = vdwg.mxu0
      %332 = vmatprep.subr.bf16.mxu0 0
      %333 = vmatpush1.bf16.msra.mxu0 %v289
      %334 = vmatprep.subr.bf16.mxu0 0
      %335 = vmatpush1.bf16.msra.mxu0 0
      %336 = vmatprep.subr.bf16.mxu0 0
      %337 = vmatpush1.bf16.msra.mxu0 0
      %338 = vmatprep.subr.bf16.mxu0 0
      %339 = vmatpush1.bf16.msra.mxu0 0
      %340 = vmatprep.subr.bf16.mxu0 0
      %341 = vmatpush1.bf16.msra.mxu0 0
      %342 = vmatprep.subr.bf16.mxu0 0
      %343 = vmatpush1.bf16.msra.mxu0 0
      %344 = vmatprep.subr.bf16.mxu0 0
      %345 = vmatpush1.bf16.msra.mxu0 0
      %346 = vmatprep.subr.bf16.mxu0 0
      %347 = vmatpush1.bf16.msra.mxu0 0
      %348 = vmatprep.subr.bf16.mxu0 0
      %349 = vmatpush1.bf16.msra.mxu0 0
      %350 = vmatprep.subr.bf16.mxu0 0
      %351 = vmatpush1.bf16.msra.mxu0 0
      %352 = vmatprep.subr.bf16.mxu0 0
      %353 = vmatpush1.bf16.msra.mxu0 0
      %354 = vmatprep.subr.bf16.mxu0 0
      %355 = vmatpush1.bf16.msra.mxu0 0
      %356 = vmatprep.subr.bf16.mxu0 0
      %357 = vmatpush1.bf16.msra.mxu0 0
      %358 = vmatprep.subr.bf16.mxu0 0
      %359 = vmatpush1.bf16.msra.mxu0 0
      %360 = vmatprep.subr.bf16.mxu0 0
      %361 = vmatpush1.bf16.msra.mxu0 0
      %362 = vmatprep.subr.bf16.mxu0 0
      %363 = vmatpush1.bf16.msra.mxu0 0
      %364 = vmatprep.mubr.bf16.mxu0 0
      %365 = vmatmul.mubr.bf16.gmra.mrb[0].mxu0 %v279
      %v366 = vpop.f32.mrb[0].mxu0
      %v367 = vadd.f32 0.0, %v366
      %v368 = vpop.f32.mrb[0].mxu0
      %v369 = vpop.f32.mrb[0].mxu0
      %v370 = vpop.f32.mrb[0].mxu0
      %371 = vdwg.mxu0
      %v373 = vsel %vm277, %v257, 0
      %v376 = vsel %vm281, %v265, 0
      %v379 = vsel %vm281, %v266, 0
      %v382 = vsel %vm281, %v267, 0
      %384 = vmatprep.subr.bf16.mxu0 %v379
      %385 = vmatpush1.bf16.msra.mxu0 %v376
      %386 = vmatprep.subr.bf16.mxu0 0
      %387 = vmatpush1.bf16.msra.mxu0 0
      %388 = vmatprep.subr.bf16.mxu0 0
      %389 = vmatpush1.bf16.msra.mxu0 0
      %390 = vmatprep.subr.bf16.mxu0 0
      %391 = vmatpush1.bf16.msra.mxu0 0
      %392 = vmatprep.subr.bf16.mxu0 0
      %393 = vmatpush1.bf16.msra.mxu0 0
      %394 = vmatprep.subr.bf16.mxu0 0
      %395 = vmatpush1.bf16.msra.mxu0 0
      %396 = vmatprep.subr.bf16.mxu0 0
      %397 = vmatpush1.bf16.msra.mxu0 0
      %398 = vmatprep.subr.bf16.mxu0 0
      %399 = vmatpush1.bf16.msra.mxu0 0
      %400 = vmatprep.subr.bf16.mxu0 0
      %401 = vmatpush1.bf16.msra.mxu0 0
      %402 = vmatprep.subr.bf16.mxu0 0
      %403 = vmatpush1.bf16.msra.mxu0 0
      %404 = vmatprep.subr.bf16.mxu0 0
      %405 = vmatpush1.bf16.msra.mxu0 0
      %406 = vmatprep.subr.bf16.mxu0 0
      %407 = vmatpush1.bf16.msra.mxu0 0
      %408 = vmatprep.subr.bf16.mxu0 0
      %409 = vmatpush1.bf16.msra.mxu0 0
      %410 = vmatprep.subr.bf16.mxu0 0
      %411 = vmatpush1.bf16.msra.mxu0 0
      %412 = vmatprep.subr.bf16.mxu0 0
      %413 = vmatpush1.bf16.msra.mxu0 0
      %414 = vmatprep.subr.bf16.mxu0 0
      %415 = vmatpush1.bf16.msra.mxu0 0
      %416 = vmatprep.mubr.bf16.mxu0 0
      %417 = vmatmul.mubr.bf16.gmra.mrb[0].mxu0 %v373
      %v418 = vpop.f32.mrb[0].mxu0
      %v419 = vadd.f32 %v326, %v418
      %v420 = vpop.f32.mrb[0].mxu0
      %v421 = vadd.f32 %v328, %v420
      %v422 = vpop.f32.mrb[0].mxu0
      %v423 = vpop.f32.mrb[0].mxu0
      %424 = vdwg.mxu0
      %425 = vmatprep.subr.bf16.mxu0 0
      %426 = vmatpush1.bf16.msra.mxu0 %v382
      %427 = vmatprep.subr.bf16.mxu0 0
      %428 = vmatpush1.bf16.msra.mxu0 0
      %429 = vmatprep.subr.bf16.mxu0 0
      %430 = vmatpush1.bf16.msra.mxu0 0
      %431 = vmatprep.subr.bf16.mxu0 0
      %432 = vmatpush1.bf16.msra.mxu0 0
      %433 = vmatprep.subr.bf16.mxu0 0
      %434 = vmatpush1.bf16.msra.mxu0 0
      %435 = vmatprep.subr.bf16.mxu0 0
      %436 = vmatpush1.bf16.msra.mxu0 0
      %437 = vmatprep.subr.bf16.mxu0 0
      %438 = vmatpush1.bf16.msra.mxu0 0
      %439 = vmatprep.subr.bf16.mxu0 0
      %440 = vmatpush1.bf16.msra.mxu0 0
      %441 = vmatprep.subr.bf16.mxu0 0
      %442 = vmatpush1.bf16.msra.mxu0 0
      %443 = vmatprep.subr.bf16.mxu0 0
      %444 = vmatpush1.bf16.msra.mxu0 0
      %445 = vmatprep.subr.bf16.mxu0 0
      %446 = vmatpush1.bf16.msra.mxu0 0
      %447 = vmatprep.subr.bf16.mxu0 0
      %448 = vmatpush1.bf16.msra.mxu0 0
      %449 = vmatprep.subr.bf16.mxu0 0
      %450 = vmatpush1.bf16.msra.mxu0 0
      %451 = vmatprep.subr.bf16.mxu0 0
      %452 = vmatpush1.bf16.msra.mxu0 0
      %453 = vmatprep.subr.bf16.mxu0 0
      %454 = vmatpush1.bf16.msra.mxu0 0
      %455 = vmatprep.subr.bf16.mxu0 0
      %456 = vmatpush1.bf16.msra.mxu0 0
      %457 = vmatprep.mubr.bf16.mxu0 0
      %458 = vmatmul.mubr.bf16.gmra.mrb[0].mxu0 %v373
      %v459 = vpop.f32.mrb[0].mxu0
      %v460 = vadd.f32 %v367, %v459
      %v461 = vpop.f32.mrb[0].mxu0
      %v462 = vpop.f32.mrb[0].mxu0
      %v463 = vpop.f32.mrb[0].mxu0
      %464 = vdwg.mxu0
      %s465 = scalar_lea.vmem %s1, 8
      %v466 = vld [vmem:[%s465] sm:$0xf]
      %467 = vrot.lane.b32.xlu0 %v265, 126
      %v468 = vpop.permute.xlu0 %467
      %469 = vrot.lane.b32.xlu0 %v266, 126
      %v470 = vpop.permute.xlu0 %469
      %471 = vrot.lane.b32.xlu0 %v267, 126
      %v472 = vpop.permute.xlu0 %471
      %vm473 = vcmask 1031168
      %v474 = vsel %vm473, %v468, %v470
      %v475 = vsel %vm473, %v470, %v472
      %v477 = vsel %vm277, %v466, 0
      %v480 = vsel %vm281, %v474, 0
      %v483 = vsel %vm281, %v475, 0
      %v486 = vsel %vm281, %v472, 0
      %488 = vmatprep.subr.bf16.mxu0 %v483
      %489 = vmatpush1.bf16.msra.mxu0 %v480
      %490 = vmatprep.subr.bf16.mxu0 0
      %491 = vmatpush1.bf16.msra.mxu0 0
      %492 = vmatprep.subr.bf16.mxu0 0
      %493 = vmatpush1.bf16.msra.mxu0 0
      %494 = vmatprep.subr.bf16.mxu0 0
      %495 = vmatpush1.bf16.msra.mxu0 0
      %496 = vmatprep.subr.bf16.mxu0 0
      %497 = vmatpush1.bf16.msra.mxu0 0
      %498 = vmatprep.subr.bf16.mxu0 0
      %499 = vmatpush1.bf16.msra.mxu0 0
      %500 = vmatprep.subr.bf16.mxu0 0
      %501 = vmatpush1.bf16.msra.mxu0 0
      %502 = vmatprep.subr.bf16.mxu0 0
      %503 = vmatpush1.bf16.msra.mxu0 0
      %504 = vmatprep.subr.bf16.mxu0 0
      %505 = vmatpush1.bf16.msra.mxu0 0
      %506 = vmatprep.subr.bf16.mxu0 0
      %507 = vmatpush1.bf16.msra.mxu0 0
      %508 = vmatprep.subr.bf16.mxu0 0
      %509 = vmatpush1.bf16.msra.mxu0 0
      %510 = vmatprep.subr.bf16.mxu0 0
      %511 = vmatpush1.bf16.msra.mxu0 0
      %512 = vmatprep.subr.bf16.mxu0 0
      %513 = vmatpush1.bf16.msra.mxu0 0
      %514 = vmatprep.subr.bf16.mxu0 0
      %515 = vmatpush1.bf16.msra.mxu0 0
      %516 = vmatprep.subr.bf16.mxu0 0
      %517 = vmatpush1.bf16.msra.mxu0 0
      %518 = vmatprep.subr.bf16.mxu0 0
      %519 = vmatpush1.bf16.msra.mxu0 0
      %520 = vmatprep.mubr.bf16.mxu0 0
      %521 = vmatmul.mubr.bf16.gmra.mrb[0].mxu0 %v477
      %v522 = vpop.f32.mrb[0].mxu0
      %v523 = vadd.f32 0.0, %v522
      %v524 = vpop.f32.mrb[0].mxu0
      %v525 = vadd.f32 0.0, %v524
      %v526 = vpop.f32.mrb[0].mxu0
      %v527 = vpop.f32.mrb[0].mxu0
      %528 = vdwg.mxu0
      %529 = vmatprep.subr.bf16.mxu0 0
      %530 = vmatpush1.bf16.msra.mxu0 %v486
      %531 = vmatprep.subr.bf16.mxu0 0
      %532 = vmatpush1.bf16.msra.mxu0 0
      %533 = vmatprep.subr.bf16.mxu0 0
      %534 = vmatpush1.bf16.msra.mxu0 0
      %535 = vmatprep.subr.bf16.mxu0 0
      %536 = vmatpush1.bf16.msra.mxu0 0
      %537 = vmatprep.subr.bf16.mxu0 0
      %538 = vmatpush1.bf16.msra.mxu0 0
      %539 = vmatprep.subr.bf16.mxu0 0
      %540 = vmatpush1.bf16.msra.mxu0 0
      %541 = vmatprep.subr.bf16.mxu0 0
      %542 = vmatpush1.bf16.msra.mxu0 0
      %543 = vmatprep.subr.bf16.mxu0 0
      %544 = vmatpush1.bf16.msra.mxu0 0
      %545 = vmatprep.subr.bf16.mxu0 0
      %546 = vmatpush1.bf16.msra.mxu0 0
      %547 = vmatprep.subr.bf16.mxu0 0
      %548 = vmatpush1.bf16.msra.mxu0 0
      %549 = vmatprep.subr.bf16.mxu0 0
      %550 = vmatpush1.bf16.msra.mxu0 0
      %551 = vmatprep.subr.bf16.mxu0 0
      %552 = vmatpush1.bf16.msra.mxu0 0
      %553 = vmatprep.subr.bf16.mxu0 0
      %554 = vmatpush1.bf16.msra.mxu0 0
      %555 = vmatprep.subr.bf16.mxu0 0
      %556 = vmatpush1.bf16.msra.mxu0 0
      %557 = vmatprep.subr.bf16.mxu0 0
      %558 = vmatpush1.bf16.msra.mxu0 0
      %559 = vmatprep.subr.bf16.mxu0 0
      %560 = vmatpush1.bf16.msra.mxu0 0
      %561 = vmatprep.mubr.bf16.mxu0 0
      %562 = vmatmul.mubr.bf16.gmra.mrb[0].mxu0 %v477
      %v563 = vpop.f32.mrb[0].mxu0
      %v564 = vadd.f32 0.0, %v563
      %v565 = vpop.f32.mrb[0].mxu0
      %v566 = vpop.f32.mrb[0].mxu0
      %v567 = vpop.f32.mrb[0].mxu0
      %568 = vdwg.mxu0
      %v569 = vadd.f32 %v419, %v523
      %v570 = vadd.f32 %v421, %v525
      %v571 = vadd.f32 %v460, %v564
      %s572 = scalar_lea.vmem %s1, 12
      %v573 = vld [vmem:[%s572] sm:$0xf]
      %574 = vrot.lane.b32.xlu0 %v265, 110
      %v575 = vpop.permute.xlu0 %574
      %576 = vrot.lane.b32.xlu0 %v266, 110
      %v577 = vpop.permute.xlu0 %576
      %578 = vrot.lane.b32.xlu0 %v267, 110
      %v579 = vpop.permute.xlu0 %578
      %vm580 = vcmask 900096
      %v581 = vsel %vm580, %v575, %v577
      %v582 = vsel %vm580, %v577, %v579
      %v584 = vsel %vm277, %v573, 0
      %v587 = vsel %vm281, %v581, 0
      %v590 = vsel %vm281, %v582, 0
      %v593 = vsel %vm281, %v579, 0
      %595 = vmatprep.subr.bf16.mxu0 %v590
      %596 = vmatpush1.bf16.msra.mxu0 %v587
      %597 = vmatprep.subr.bf16.mxu0 0
      %598 = vmatpush1.bf16.msra.mxu0 0
      %599 = vmatprep.subr.bf16.mxu0 0
      %600 = vmatpush1.bf16.msra.mxu0 0
      %601 = vmatprep.subr.bf16.mxu0 0
      %602 = vmatpush1.bf16.msra.mxu0 0
      %603 = vmatprep.subr.bf16.mxu0 0
      %604 = vmatpush1.bf16.msra.mxu0 0
      %605 = vmatprep.subr.bf16.mxu0 0
      %606 = vmatpush1.bf16.msra.mxu0 0
      %607 = vmatprep.subr.bf16.mxu0 0
      %608 = vmatpush1.bf16.msra.mxu0 0
      %609 = vmatprep.subr.bf16.mxu0 0
      %610 = vmatpush1.bf16.msra.mxu0 0
      %611 = vmatprep.subr.bf16.mxu0 0
      %612 = vmatpush1.bf16.msra.mxu0 0
      %613 = vmatprep.subr.bf16.mxu0 0
      %614 = vmatpush1.bf16.msra.mxu0 0
      %615 = vmatprep.subr.bf16.mxu0 0
      %616 = vmatpush1.bf16.msra.mxu0 0
      %617 = vmatprep.subr.bf16.mxu0 0
      %618 = vmatpush1.bf16.msra.mxu0 0
      %619 = vmatprep.subr.bf16.mxu0 0
      %620 = vmatpush1.bf16.msra.mxu0 0
      %621 = vmatprep.subr.bf16.mxu0 0
      %622 = vmatpush1.bf16.msra.mxu0 0
      %623 = vmatprep.subr.bf16.mxu0 0
      %624 = vmatpush1.bf16.msra.mxu0 0
      %625 = vmatprep.subr.bf16.mxu0 0
      %626 = vmatpush1.bf16.msra.mxu0 0
      %627 = vmatprep.mubr.bf16.mxu0 0
      %628 = vmatmul.mubr.bf16.gmra.mrb[0].mxu0 %v584
      %v629 = vpop.f32.mrb[0].mxu0
      %v630 = vadd.f32 0.0, %v629
      %v631 = vpop.f32.mrb[0].mxu0
      %v632 = vadd.f32 0.0, %v631
      %v633 = vpop.f32.mrb[0].mxu0
      %v634 = vpop.f32.mrb[0].mxu0
      %635 = vdwg.mxu0
      %636 = vmatprep.subr.bf16.mxu0 0
      %637 = vmatpush1.bf16.msra.mxu0 %v593
      %638 = vmatprep.subr.bf16.mxu0 0
      %639 = vmatpush1.bf16.msra.mxu0 0
      %640 = vmatprep.subr.bf16.mxu0 0
      %641 = vmatpush1.bf16.msra.mxu0 0
      %642 = vmatprep.subr.bf16.mxu0 0
      %643 = vmatpush1.bf16.msra.mxu0 0
      %644 = vmatprep.subr.bf16.mxu0 0
      %645 = vmatpush1.bf16.msra.mxu0 0
      %646 = vmatprep.subr.bf16.mxu0 0
      %647 = vmatpush1.bf16.msra.mxu0 0
      %648 = vmatprep.subr.bf16.mxu0 0
      %649 = vmatpush1.bf16.msra.mxu0 0
      %650 = vmatprep.subr.bf16.mxu0 0
      %651 = vmatpush1.bf16.msra.mxu0 0
      %652 = vmatprep.subr.bf16.mxu0 0
      %653 = vmatpush1.bf16.msra.mxu0 0
      %654 = vmatprep.subr.bf16.mxu0 0
      %655 = vmatpush1.bf16.msra.mxu0 0
      %656 = vmatprep.subr.bf16.mxu0 0
      %657 = vmatpush1.bf16.msra.mxu0 0
      %658 = vmatprep.subr.bf16.mxu0 0
      %659 = vmatpush1.bf16.msra.mxu0 0
      %660 = vmatprep.subr.bf16.mxu0 0
      %661 = vmatpush1.bf16.msra.mxu0 0
      %662 = vmatprep.subr.bf16.mxu0 0
      %663 = vmatpush1.bf16.msra.mxu0 0
      %664 = vmatprep.subr.bf16.mxu0 0
      %665 = vmatpush1.bf16.msra.mxu0 0
      %666 = vmatprep.subr.bf16.mxu0 0
      %667 = vmatpush1.bf16.msra.mxu0 0
      %668 = vmatprep.mubr.bf16.mxu0 0
      %669 = vmatmul.mubr.bf16.gmra.mrb[0].mxu0 %v584
      %v670 = vpop.f32.mrb[0].mxu0
      %v671 = vadd.f32 0.0, %v670
      %v672 = vpop.f32.mrb[0].mxu0
      %v673 = vpop.f32.mrb[0].mxu0
      %v674 = vpop.f32.mrb[0].mxu0
      %675 = vdwg.mxu0
      %v676 = vadd.f32 %v569, %v630
      %v677 = vadd.f32 %v570, %v632
      %v678 = vadd.f32 %v571, %v671
      %s679 = scalar_lea.vmem %s1, 16
      %v680 = vld [vmem:[%s679] sm:$0xf]
      %681 = vrot.lane.b32.xlu0 %v265, 109
      %v682 = vpop.permute.xlu0 %681
      %683 = vrot.lane.b32.xlu0 %v266, 109
      %v684 = vpop.permute.xlu0 %683
      %685 = vrot.lane.b32.xlu0 %v267, 109
      %v686 = vpop.permute.xlu0 %685
      %vm687 = vcmask 891904
      %v688 = vsel %vm687, %v682, %v684
      %v689 = vsel %vm687, %v684, %v686
      %v691 = vsel %vm277, %v680, 0
      %v694 = vsel %vm281, %v688, 0
      %v697 = vsel %vm281, %v689, 0
      %v700 = vsel %vm281, %v686, 0
      %702 = vmatprep.subr.bf16.mxu0 %v697
      %703 = vmatpush1.bf16.msra.mxu0 %v694
      %704 = vmatprep.subr.bf16.mxu0 0
      %705 = vmatpush1.bf16.msra.mxu0 0
      %706 = vmatprep.subr.bf16.mxu0 0
      %707 = vmatpush1.bf16.msra.mxu0 0
      %708 = vmatprep.subr.bf16.mxu0 0
      %709 = vmatpush1.bf16.msra.mxu0 0
      %710 = vmatprep.subr.bf16.mxu0 0
      %711 = vmatpush1.bf16.msra.mxu0 0
      %712 = vmatprep.subr.bf16.mxu0 0
      %713 = vmatpush1.bf16.msra.mxu0 0
      %714 = vmatprep.subr.bf16.mxu0 0
      %715 = vmatpush1.bf16.msra.mxu0 0
      %716 = vmatprep.subr.bf16.mxu0 0
      %717 = vmatpush1.bf16.msra.mxu0 0
      %718 = vmatprep.subr.bf16.mxu0 0
      %719 = vmatpush1.bf16.msra.mxu0 0
      %720 = vmatprep.subr.bf16.mxu0 0
      %721 = vmatpush1.bf16.msra.mxu0 0
      %722 = vmatprep.subr.bf16.mxu0 0
      %723 = vmatpush1.bf16.msra.mxu0 0
      %724 = vmatprep.subr.bf16.mxu0 0
      %725 = vmatpush1.bf16.msra.mxu0 0
      %726 = vmatprep.subr.bf16.mxu0 0
      %727 = vmatpush1.bf16.msra.mxu0 0
      %728 = vmatprep.subr.bf16.mxu0 0
      %729 = vmatpush1.bf16.msra.mxu0 0
      %730 = vmatprep.subr.bf16.mxu0 0
      %731 = vmatpush1.bf16.msra.mxu0 0
      %732 = vmatprep.subr.bf16.mxu0 0
      %733 = vmatpush1.bf16.msra.mxu0 0
      %734 = vmatprep.mubr.bf16.mxu0 0
      %735 = vmatmul.mubr.bf16.gmra.mrb[0].mxu0 %v691
      %v736 = vpop.f32.mrb[0].mxu0
      %v737 = vadd.f32 0.0, %v736
      %v738 = vpop.f32.mrb[0].mxu0
      %v739 = vadd.f32 0.0, %v738
      %v740 = vpop.f32.mrb[0].mxu0
      %v741 = vpop.f32.mrb[0].mxu0
      %742 = vdwg.mxu0
      %743 = vmatprep.subr.bf16.mxu0 0
      %744 = vmatpush1.bf16.msra.mxu0 %v700
      %745 = vmatprep.subr.bf16.mxu0 0
      %746 = vmatpush1.bf16.msra.mxu0 0
      %747 = vmatprep.subr.bf16.mxu0 0
      %748 = vmatpush1.bf16.msra.mxu0 0
      %749 = vmatprep.subr.bf16.mxu0 0
      %750 = vmatpush1.bf16.msra.mxu0 0
      %751 = vmatprep.subr.bf16.mxu0 0
      %752 = vmatpush1.bf16.msra.mxu0 0
      %753 = vmatprep.subr.bf16.mxu0 0
      %754 = vmatpush1.bf16.msra.mxu0 0
      %755 = vmatprep.subr.bf16.mxu0 0
      %756 = vmatpush1.bf16.msra.mxu0 0
      %757 = vmatprep.subr.bf16.mxu0 0
      %758 = vmatpush1.bf16.msra.mxu0 0
      %759 = vmatprep.subr.bf16.mxu0 0
      %760 = vmatpush1.bf16.msra.mxu0 0
      %761 = vmatprep.subr.bf16.mxu0 0
      %762 = vmatpush1.bf16.msra.mxu0 0
      %763 = vmatprep.subr.bf16.mxu0 0
      %764 = vmatpush1.bf16.msra.mxu0 0
      %765 = vmatprep.subr.bf16.mxu0 0
      %766 = vmatpush1.bf16.msra.mxu0 0
      %767 = vmatprep.subr.bf16.mxu0 0
      %768 = vmatpush1.bf16.msra.mxu0 0
      %769 = vmatprep.subr.bf16.mxu0 0
      %770 = vmatpush1.bf16.msra.mxu0 0
      %771 = vmatprep.subr.bf16.mxu0 0
      %772 = vmatpush1.bf16.msra.mxu0 0
      %773 = vmatprep.subr.bf16.mxu0 0
      %774 = vmatpush1.bf16.msra.mxu0 0
      %775 = vmatprep.mubr.bf16.mxu0 0
      %776 = vmatmul.mubr.bf16.gmra.mrb[0].mxu0 %v691
      %v777 = vpop.f32.mrb[0].mxu0
      %v778 = vadd.f32 0.0, %v777
      %v779 = vpop.f32.mrb[0].mxu0
      %v780 = vpop.f32.mrb[0].mxu0
      %v781 = vpop.f32.mrb[0].mxu0
      %782 = vdwg.mxu0
      %v783 = vadd.f32 %v676, %v737
      %v784 = vadd.f32 %v677, %v739
      %v785 = vadd.f32 %v678, %v778
      %s786 = scalar_lea.vmem %s1, 20
      %v787 = vld [vmem:[%s786] sm:$0xf]
      %788 = vrot.lane.b32.xlu0 %v265, 108
      %v789 = vpop.permute.xlu0 %788
      %790 = vrot.lane.b32.xlu0 %v266, 108
      %v791 = vpop.permute.xlu0 %790
      %792 = vrot.lane.b32.xlu0 %v267, 108
      %v793 = vpop.permute.xlu0 %792
      %vm794 = vcmask 883712
      %v795 = vsel %vm794, %v789, %v791
      %v796 = vsel %vm794, %v791, %v793
      %v798 = vsel %vm277, %v787, 0
      %v801 = vsel %vm281, %v795, 0
      %v804 = vsel %vm281, %v796, 0
      %v807 = vsel %vm281, %v793, 0
      %809 = vmatprep.subr.bf16.mxu0 %v804
      %810 = vmatpush1.bf16.msra.mxu0 %v801
      %811 = vmatprep.subr.bf16.mxu0 0
      %812 = vmatpush1.bf16.msra.mxu0 0
      %813 = vmatprep.subr.bf16.mxu0 0
      %814 = vmatpush1.bf16.msra.mxu0 0
      %815 = vmatprep.subr.bf16.mxu0 0
      %816 = vmatpush1.bf16.msra.mxu0 0
      %817 = vmatprep.subr.bf16.mxu0 0
      %818 = vmatpush1.bf16.msra.mxu0 0
      %819 = vmatprep.subr.bf16.mxu0 0
      %820 = vmatpush1.bf16.msra.mxu0 0
      %821 = vmatprep.subr.bf16.mxu0 0
      %822 = vmatpush1.bf16.msra.mxu0 0
      %823 = vmatprep.subr.bf16.mxu0 0
      %824 = vmatpush1.bf16.msra.mxu0 0
      %825 = vmatprep.subr.bf16.mxu0 0
      %826 = vmatpush1.bf16.msra.mxu0 0
      %827 = vmatprep.subr.bf16.mxu0 0
      %828 = vmatpush1.bf16.msra.mxu0 0
      %829 = vmatprep.subr.bf16.mxu0 0
      %830 = vmatpush1.bf16.msra.mxu0 0
      %831 = vmatprep.subr.bf16.mxu0 0
      %832 = vmatpush1.bf16.msra.mxu0 0
      %833 = vmatprep.subr.bf16.mxu0 0
      %834 = vmatpush1.bf16.msra.mxu0 0
      %835 = vmatprep.subr.bf16.mxu0 0
      %836 = vmatpush1.bf16.msra.mxu0 0
      %837 = vmatprep.subr.bf16.mxu0 0
      %838 = vmatpush1.bf16.msra.mxu0 0
      %839 = vmatprep.subr.bf16.mxu0 0
      %840 = vmatpush1.bf16.msra.mxu0 0
      %841 = vmatprep.mubr.bf16.mxu0 0
      %842 = vmatmul.mubr.bf16.gmra.mrb[0].mxu0 %v798
      %v843 = vpop.f32.mrb[0].mxu0
      %v844 = vadd.f32 0.0, %v843
      %v845 = vpop.f32.mrb[0].mxu0
      %v846 = vadd.f32 0.0, %v845
      %v847 = vpop.f32.mrb[0].mxu0
      %v848 = vpop.f32.mrb[0].mxu0
      %849 = vdwg.mxu0
      %850 = vmatprep.subr.bf16.mxu0 0
      %851 = vmatpush1.bf16.msra.mxu0 %v807
      %852 = vmatprep.subr.bf16.mxu0 0
      %853 = vmatpush1.bf16.msra.mxu0 0
      %854 = vmatprep.subr.bf16.mxu0 0
      %855 = vmatpush1.bf16.msra.mxu0 0
      %856 = vmatprep.subr.bf16.mxu0 0
      %857 = vmatpush1.bf16.msra.mxu0 0
      %858 = vmatprep.subr.bf16.mxu0 0
      %859 = vmatpush1.bf16.msra.mxu0 0
      %860 = vmatprep.subr.bf16.mxu0 0
      %861 = vmatpush1.bf16.msra.mxu0 0
      %862 = vmatprep.subr.bf16.mxu0 0
      %863 = vmatpush1.bf16.msra.mxu0 0
      %864 = vmatprep.subr.bf16.mxu0 0
      %865 = vmatpush1.bf16.msra.mxu0 0
      %866 = vmatprep.subr.bf16.mxu0 0
      %867 = vmatpush1.bf16.msra.mxu0 0
      %868 = vmatprep.subr.bf16.mxu0 0
      %869 = vmatpush1.bf16.msra.mxu0 0
      %870 = vmatprep.subr.bf16.mxu0 0
      %871 = vmatpush1.bf16.msra.mxu0 0
      %872 = vmatprep.subr.bf16.mxu0 0
      %873 = vmatpush1.bf16.msra.mxu0 0
      %874 = vmatprep.subr.bf16.mxu0 0
      %875 = vmatpush1.bf16.msra.mxu0 0
      %876 = vmatprep.subr.bf16.mxu0 0
      %877 = vmatpush1.bf16.msra.mxu0 0
      %878 = vmatprep.subr.bf16.mxu0 0
      %879 = vmatpush1.bf16.msra.mxu0 0
      %880 = vmatprep.subr.bf16.mxu0 0
      %881 = vmatpush1.bf16.msra.mxu0 0
      %882 = vmatprep.mubr.bf16.mxu0 0
      %883 = vmatmul.mubr.bf16.gmra.mrb[0].mxu0 %v798
      %v884 = vpop.f32.mrb[0].mxu0
      %v885 = vadd.f32 0.0, %v884
      %v886 = vpop.f32.mrb[0].mxu0
      %v887 = vpop.f32.mrb[0].mxu0
      %v888 = vpop.f32.mrb[0].mxu0
      %889 = vdwg.mxu0
      %v890 = vadd.f32 %v783, %v844
      %v891 = vadd.f32 %v784, %v846
      %v892 = vadd.f32 %v785, %v885
      %s893 = scalar_lea.vmem %s1, 24
      %v894 = vld [vmem:[%s893] sm:$0xf]
      %895 = vrot.lane.b32.xlu0 %v265, 92
      %v896 = vpop.permute.xlu0 %895
      %897 = vrot.lane.b32.xlu0 %v266, 92
      %v898 = vpop.permute.xlu0 %897
      %899 = vrot.lane.b32.xlu0 %v267, 92
      %v900 = vpop.permute.xlu0 %899
      %vm901 = vcmask 752640
      %v902 = vsel %vm901, %v896, %v898
      %v903 = vsel %vm901, %v898, %v900
      %v905 = vsel %vm277, %v894, 0
      %v908 = vsel %vm281, %v902, 0
      %v911 = vsel %vm281, %v903, 0
      %v914 = vsel %vm281, %v900, 0
      %916 = vmatprep.subr.bf16.mxu0 %v911
      %917 = vmatpush1.bf16.msra.mxu0 %v908
      %918 = vmatprep.subr.bf16.mxu0 0
      %919 = vmatpush1.bf16.msra.mxu0 0
      %920 = vmatprep.subr.bf16.mxu0 0
      %921 = vmatpush1.bf16.msra.mxu0 0
      %922 = vmatprep.subr.bf16.mxu0 0
      %923 = vmatpush1.bf16.msra.mxu0 0
      %924 = vmatprep.subr.bf16.mxu0 0
      %925 = vmatpush1.bf16.msra.mxu0 0
      %926 = vmatprep.subr.bf16.mxu0 0
      %927 = vmatpush1.bf16.msra.mxu0 0
      %928 = vmatprep.subr.bf16.mxu0 0
      %929 = vmatpush1.bf16.msra.mxu0 0
      %930 = vmatprep.subr.bf16.mxu0 0
      %931 = vmatpush1.bf16.msra.mxu0 0
      %932 = vmatprep.subr.bf16.mxu0 0
      %933 = vmatpush1.bf16.msra.mxu0 0
      %934 = vmatprep.subr.bf16.mxu0 0
      %935 = vmatpush1.bf16.msra.mxu0 0
      %936 = vmatprep.subr.bf16.mxu0 0
      %937 = vmatpush1.bf16.msra.mxu0 0
      %938 = vmatprep.subr.bf16.mxu0 0
      %939 = vmatpush1.bf16.msra.mxu0 0
      %940 = vmatprep.subr.bf16.mxu0 0
      %941 = vmatpush1.bf16.msra.mxu0 0
      %942 = vmatprep.subr.bf16.mxu0 0
      %943 = vmatpush1.bf16.msra.mxu0 0
      %944 = vmatprep.subr.bf16.mxu0 0
      %945 = vmatpush1.bf16.msra.mxu0 0
      %946 = vmatprep.subr.bf16.mxu0 0
      %947 = vmatpush1.bf16.msra.mxu0 0
      %948 = vmatprep.mubr.bf16.mxu0 0
      %949 = vmatmul.mubr.bf16.gmra.mrb[0].mxu0 %v905
      %v950 = vpop.f32.mrb[0].mxu0
      %v951 = vadd.f32 0.0, %v950
      %v952 = vpop.f32.mrb[0].mxu0
      %v953 = vadd.f32 0.0, %v952
      %v954 = vpop.f32.mrb[0].mxu0
      %v955 = vpop.f32.mrb[0].mxu0
      %956 = vdwg.mxu0
      %957 = vmatprep.subr.bf16.mxu0 0
      %958 = vmatpush1.bf16.msra.mxu0 %v914
      %959 = vmatprep.subr.bf16.mxu0 0
      %960 = vmatpush1.bf16.msra.mxu0 0
      %961 = vmatprep.subr.bf16.mxu0 0
      %962 = vmatpush1.bf16.msra.mxu0 0
      %963 = vmatprep.subr.bf16.mxu0 0
      %964 = vmatpush1.bf16.msra.mxu0 0
      %965 = vmatprep.subr.bf16.mxu0 0
      %966 = vmatpush1.bf16.msra.mxu0 0
      %967 = vmatprep.subr.bf16.mxu0 0
      %968 = vmatpush1.bf16.msra.mxu0 0
      %969 = vmatprep.subr.bf16.mxu0 0
      %970 = vmatpush1.bf16.msra.mxu0 0
      %971 = vmatprep.subr.bf16.mxu0 0
      %972 = vmatpush1.bf16.msra.mxu0 0
      %973 = vmatprep.subr.bf16.mxu0 0
      %974 = vmatpush1.bf16.msra.mxu0 0
      %975 = vmatprep.subr.bf16.mxu0 0
      %976 = vmatpush1.bf16.msra.mxu0 0
      %977 = vmatprep.subr.bf16.mxu0 0
      %978 = vmatpush1.bf16.msra.mxu0 0
      %979 = vmatprep.subr.bf16.mxu0 0
      %980 = vmatpush1.bf16.msra.mxu0 0
      %981 = vmatprep.subr.bf16.mxu0 0
      %982 = vmatpush1.bf16.msra.mxu0 0
      %983 = vmatprep.subr.bf16.mxu0 0
      %984 = vmatpush1.bf16.msra.mxu0 0
      %985 = vmatprep.subr.bf16.mxu0 0
      %986 = vmatpush1.bf16.msra.mxu0 0
      %987 = vmatprep.subr.bf16.mxu0 0
      %988 = vmatpush1.bf16.msra.mxu0 0
      %989 = vmatprep.mubr.bf16.mxu0 0
      %990 = vmatmul.mubr.bf16.gmra.mrb[0].mxu0 %v905
      %v991 = vpop.f32.mrb[0].mxu0
      %v992 = vadd.f32 0.0, %v991
      %v993 = vpop.f32.mrb[0].mxu0
      %v994 = vpop.f32.mrb[0].mxu0
      %v995 = vpop.f32.mrb[0].mxu0
      %996 = vdwg.mxu0
      %v997 = vadd.f32 %v890, %v951
      %v998 = vadd.f32 %v891, %v953
      %v999 = vadd.f32 %v892, %v992
      %s1000 = scalar_lea.vmem %s1, 28
      %v1001 = vld [vmem:[%s1000] sm:$0xf]
      %1002 = vrot.lane.b32.xlu0 %v265, 91
      %v1003 = vpop.permute.xlu0 %1002
      %1004 = vrot.lane.b32.xlu0 %v266, 91
      %v1005 = vpop.permute.xlu0 %1004
      %1006 = vrot.lane.b32.xlu0 %v267, 91
      %v1007 = vpop.permute.xlu0 %1006
      %vm1008 = vcmask 744448
      %v1009 = vsel %vm1008, %v1003, %v1005
      %v1010 = vsel %vm1008, %v1005, %v1007
      %v1012 = vsel %vm277, %v1001, 0
      %v1015 = vsel %vm281, %v1009, 0
      %v1018 = vsel %vm281, %v1010, 0
      %v1021 = vsel %vm281, %v1007, 0
      %1023 = vmatprep.subr.bf16.mxu0 %v1018
      %1024 = vmatpush1.bf16.msra.mxu0 %v1015
      %1025 = vmatprep.subr.bf16.mxu0 0
      %1026 = vmatpush1.bf16.msra.mxu0 0
      %1027 = vmatprep.subr.bf16.mxu0 0
      %1028 = vmatpush1.bf16.msra.mxu0 0
      %1029 = vmatprep.subr.bf16.mxu0 0
      %1030 = vmatpush1.bf16.msra.mxu0 0
      %1031 = vmatprep.subr.bf16.mxu0 0
      %1032 = vmatpush1.bf16.msra.mxu0 0
      %1033 = vmatprep.subr.bf16.mxu0 0
      %1034 = vmatpush1.bf16.msra.mxu0 0
      %1035 = vmatprep.subr.bf16.mxu0 0
      %1036 = vmatpush1.bf16.msra.mxu0 0
      %1037 = vmatprep.subr.bf16.mxu0 0
      %1038 = vmatpush1.bf16.msra.mxu0 0
      %1039 = vmatprep.subr.bf16.mxu0 0
      %1040 = vmatpush1.bf16.msra.mxu0 0
      %1041 = vmatprep.subr.bf16.mxu0 0
      %1042 = vmatpush1.bf16.msra.mxu0 0
      %1043 = vmatprep.subr.bf16.mxu0 0
      %1044 = vmatpush1.bf16.msra.mxu0 0
      %1045 = vmatprep.subr.bf16.mxu0 0
      %1046 = vmatpush1.bf16.msra.mxu0 0
      %1047 = vmatprep.subr.bf16.mxu0 0
      %1048 = vmatpush1.bf16.msra.mxu0 0
      %1049 = vmatprep.subr.bf16.mxu0 0
      %1050 = vmatpush1.bf16.msra.mxu0 0
      %1051 = vmatprep.subr.bf16.mxu0 0
      %1052 = vmatpush1.bf16.msra.mxu0 0
      %1053 = vmatprep.subr.bf16.mxu0 0
      %1054 = vmatpush1.bf16.msra.mxu0 0
      %1055 = vmatprep.mubr.bf16.mxu0 0
      %1056 = vmatmul.mubr.bf16.gmra.mrb[0].mxu0 %v1012
      %v1057 = vpop.f32.mrb[0].mxu0
      %v1058 = vadd.f32 0.0, %v1057
      %v1059 = vpop.f32.mrb[0].mxu0
      %v1060 = vadd.f32 0.0, %v1059
      %v1061 = vpop.f32.mrb[0].mxu0
      %v1062 = vpop.f32.mrb[0].mxu0
      %1063 = vdwg.mxu0
      %1064 = vmatprep.subr.bf16.mxu0 0
      %1065 = vmatpush1.bf16.msra.mxu0 %v1021
      %1066 = vmatprep.subr.bf16.mxu0 0
      %1067 = vmatpush1.bf16.msra.mxu0 0
      %1068 = vmatprep.subr.bf16.mxu0 0
      %1069 = vmatpush1.bf16.msra.mxu0 0
      %1070 = vmatprep.subr.bf16.mxu0 0
      %1071 = vmatpush1.bf16.msra.mxu0 0
      %1072 = vmatprep.subr.bf16.mxu0 0
      %1073 = vmatpush1.bf16.msra.mxu0 0
      %1074 = vmatprep.subr.bf16.mxu0 0
      %1075 = vmatpush1.bf16.msra.mxu0 0
      %1076 = vmatprep.subr.bf16.mxu0 0
      %1077 = vmatpush1.bf16.msra.mxu0 0
      %1078 = vmatprep.subr.bf16.mxu0 0
      %1079 = vmatpush1.bf16.msra.mxu0 0
      %1080 = vmatprep.subr.bf16.mxu0 0
      %1081 = vmatpush1.bf16.msra.mxu0 0
      %1082 = vmatprep.subr.bf16.mxu0 0
      %1083 = vmatpush1.bf16.msra.mxu0 0
      %1084 = vmatprep.subr.bf16.mxu0 0
      %1085 = vmatpush1.bf16.msra.mxu0 0
      %1086 = vmatprep.subr.bf16.mxu0 0
      %1087 = vmatpush1.bf16.msra.mxu0 0
      %1088 = vmatprep.subr.bf16.mxu0 0
      %1089 = vmatpush1.bf16.msra.mxu0 0
      %1090 = vmatprep.subr.bf16.mxu0 0
      %1091 = vmatpush1.bf16.msra.mxu0 0
      %1092 = vmatprep.subr.bf16.mxu0 0
      %1093 = vmatpush1.bf16.msra.mxu0 0
      %1094 = vmatprep.subr.bf16.mxu0 0
      %1095 = vmatpush1.bf16.msra.mxu0 0
      %1096 = vmatprep.mubr.bf16.mxu0 0
      %1097 = vmatmul.mubr.bf16.gmra.mrb[0].mxu0 %v1012
      %v1098 = vpop.f32.mrb[0].mxu0
      %v1099 = vadd.f32 0.0, %v1098
      %v1100 = vpop.f32.mrb[0].mxu0
      %v1101 = vpop.f32.mrb[0].mxu0
      %v1102 = vpop.f32.mrb[0].mxu0
      %1103 = vdwg.mxu0
      %v1104 = vadd.f32 %v997, %v1058
      %v1105 = vadd.f32 %v998, %v1060
      %v1106 = vadd.f32 %v999, %v1099
      %s1107 = scalar_lea.vmem %s1, 32
      %v1108 = vld [vmem:[%s1107] sm:$0xf]
      %1109 = vrot.lane.b32.xlu0 %v265, 90
      %v1110 = vpop.permute.xlu0 %1109
      %1111 = vrot.lane.b32.xlu0 %v266, 90
      %v1112 = vpop.permute.xlu0 %1111
      %1113 = vrot.lane.b32.xlu0 %v267, 90
      %v1114 = vpop.permute.xlu0 %1113
      %vm1115 = vcmask 736256
      %v1116 = vsel %vm1115, %v1110, %v1112
      %v1117 = vsel %vm1115, %v1112, %v1114
      %v1119 = vsel %vm277, %v1108, 0
      %v1122 = vsel %vm281, %v1116, 0
      %v1125 = vsel %vm281, %v1117, 0
      %v1128 = vsel %vm281, %v1114, 0
      %1130 = vmatprep.subr.bf16.mxu0 %v1125
      %1131 = vmatpush1.bf16.msra.mxu0 %v1122
      %1132 = vmatprep.subr.bf16.mxu0 0
      %1133 = vmatpush1.bf16.msra.mxu0 0
      %1134 = vmatprep.subr.bf16.mxu0 0
      %1135 = vmatpush1.bf16.msra.mxu0 0
      %1136 = vmatprep.subr.bf16.mxu0 0
      %1137 = vmatpush1.bf16.msra.mxu0 0
      %1138 = vmatprep.subr.bf16.mxu0 0
      %1139 = vmatpush1.bf16.msra.mxu0 0
      %1140 = vmatprep.subr.bf16.mxu0 0
      %1141 = vmatpush1.bf16.msra.mxu0 0
      %1142 = vmatprep.subr.bf16.mxu0 0
      %1143 = vmatpush1.bf16.msra.mxu0 0
      %1144 = vmatprep.subr.bf16.mxu0 0
      %1145 = vmatpush1.bf16.msra.mxu0 0
      %1146 = vmatprep.subr.bf16.mxu0 0
      %1147 = vmatpush1.bf16.msra.mxu0 0
      %1148 = vmatprep.subr.bf16.mxu0 0
      %1149 = vmatpush1.bf16.msra.mxu0 0
      %1150 = vmatprep.subr.bf16.mxu0 0
      %1151 = vmatpush1.bf16.msra.mxu0 0
      %1152 = vmatprep.subr.bf16.mxu0 0
      %1153 = vmatpush1.bf16.msra.mxu0 0
      %1154 = vmatprep.subr.bf16.mxu0 0
      %1155 = vmatpush1.bf16.msra.mxu0 0
      %1156 = vmatprep.subr.bf16.mxu0 0
      %1157 = vmatpush1.bf16.msra.mxu0 0
      %1158 = vmatprep.subr.bf16.mxu0 0
      %1159 = vmatpush1.bf16.msra.mxu0 0
      %1160 = vmatprep.subr.bf16.mxu0 0
      %1161 = vmatpush1.bf16.msra.mxu0 0
      %1162 = vmatprep.mubr.bf16.mxu0 0
      %1163 = vmatmul.mubr.bf16.gmra.mrb[0].mxu0 %v1119
      %v1164 = vpop.f32.mrb[0].mxu0
      %v1165 = vadd.f32 0.0, %v1164
      %v1166 = vpop.f32.mrb[0].mxu0
      %v1167 = vadd.f32 0.0, %v1166
      %v1168 = vpop.f32.mrb[0].mxu0
      %v1169 = vpop.f32.mrb[0].mxu0
      %1170 = vdwg.mxu0
      %1171 = vmatprep.subr.bf16.mxu0 0
      %1172 = vmatpush1.bf16.msra.mxu0 %v1128
      %1173 = vmatprep.subr.bf16.mxu0 0
      %1174 = vmatpush1.bf16.msra.mxu0 0
      %1175 = vmatprep.subr.bf16.mxu0 0
      %1176 = vmatpush1.bf16.msra.mxu0 0
      %1177 = vmatprep.subr.bf16.mxu0 0
      %1178 = vmatpush1.bf16.msra.mxu0 0
      %1179 = vmatprep.subr.bf16.mxu0 0
      %1180 = vmatpush1.bf16.msra.mxu0 0
      %1181 = vmatprep.subr.bf16.mxu0 0
      %1182 = vmatpush1.bf16.msra.mxu0 0
      %1183 = vmatprep.subr.bf16.mxu0 0
      %1184 = vmatpush1.bf16.msra.mxu0 0
      %1185 = vmatprep.subr.bf16.mxu0 0
      %1186 = vmatpush1.bf16.msra.mxu0 0
      %1187 = vmatprep.subr.bf16.mxu0 0
      %1188 = vmatpush1.bf16.msra.mxu0 0
      %1189 = vmatprep.subr.bf16.mxu0 0
      %1190 = vmatpush1.bf16.msra.mxu0 0
      %1191 = vmatprep.subr.bf16.mxu0 0
      %1192 = vmatpush1.bf16.msra.mxu0 0
      %1193 = vmatprep.subr.bf16.mxu0 0
      %1194 = vmatpush1.bf16.msra.mxu0 0
      %1195 = vmatprep.subr.bf16.mxu0 0
      %1196 = vmatpush1.bf16.msra.mxu0 0
      %1197 = vmatprep.subr.bf16.mxu0 0
      %1198 = vmatpush1.bf16.msra.mxu0 0
      %1199 = vmatprep.subr.bf16.mxu0 0
      %1200 = vmatpush1.bf16.msra.mxu0 0
      %1201 = vmatprep.subr.bf16.mxu0 0
      %1202 = vmatpush1.bf16.msra.mxu0 0
      %1203 = vmatprep.mubr.bf16.mxu0 0
      %1204 = vmatmul.mubr.bf16.gmra.mrb[0].mxu0 %v1119
      %v1205 = vpop.f32.mrb[0].mxu0
      %v1206 = vadd.f32 0.0, %v1205
      %v1207 = vpop.f32.mrb[0].mxu0
      %v1208 = vpop.f32.mrb[0].mxu0
      %v1209 = vpop.f32.mrb[0].mxu0
      %1210 = vdwg.mxu0
      %v1211 = vadd.f32 %v1104, %v1165
      %v1212 = vadd.f32 %v1105, %v1167
      %v1213 = vadd.f32 %v1106, %v1206
      %v1214 = vld [vmem:[%s2] sm:$0xff]
      %1216 = vset.pattern.permute.xlu0 0
      %1217 = vperm.xlu0 %1216, %v1214
      %v1218 = vpop.permute.xlu0 %1217
      %v1220 = vadd.f32 %v1211, %v1218
      %v1221 = vadd.f32 %v1212, %v1218
      %v1222 = vadd.f32 %v1213, %v1218
      %1223 = vst [vmem:[%s246] sm:$0xff] %v1220
      %1224 = vst [vmem:[%s246 + $0x8] sm:$0xff] %v1221
      %vm1225 = vcmask 261120
      %1226 = vst.msk [vmem:[%s246 + $0x10] sm:$0xff] %vm1225, %v1222
      %v1227 = vld [vmem:[%s3] sm:$0x7]
      %v1229 = vlaneseq
      %v1230 = vshrl.u32 %v1229, 7
      %v1231 = vsub.s32 0, %v1230
      %v1232 = vrot.slane %v1227, %v1231
      %v1233 = vlaneseq
      %v1234 = vshrl.u32 %v1233, 7
      %v1235 = vsub.s32 1, %v1234
      %v1236 = vrot.slane %v1227, %v1235
      %v1237 = vlaneseq
      %v1238 = vshrl.u32 %v1237, 7
      %v1239 = vsub.s32 2, %v1238
      %v1240 = vrot.slane %v1227, %v1239
      %v1244 = vmul.f32 %v1220, %v1232
      %v1245 = vmul.f32 %v1221, %v1236
      %v1246 = vmul.f32 %v1222, %v1240
      %v1247 = vld [vmem:[%s5] sm:$0xff]
      %v1248 = vadd.f32 %v1244, %v1245
      %v1249 = vsel %vm1225, %v1246, 0.0
      %v1250 = vadd.f32 %v1248, %v1249
      %1251 = vadd.xlane.f32.xlu0 %v1250
      %v1252 = vpop.xlane.xlu0 %1251
      %v1253 = vadd.f32 %v1247, %v1252
      %vm1254 = vcmask 7168
      %1255 = vst.msk [vmem:[%s5] sm:$0xff] %vm1254, %v1253
      %v1256 = vld [vmem:[%s6] sm:$0xff]
      %v1257 = vmul.f32 %v1244, %v1244
      %v1258 = vmul.f32 %v1245, %v1245
      %v1259 = vmul.f32 %v1246, %v1246
      %v1260 = vadd.f32 %v1257, %v1258
      %v1261 = vsel %vm1225, %v1259, 0.0
      %v1262 = vadd.f32 %v1260, %v1261
      %1263 = vadd.xlane.f32.xlu0 %v1262
      %v1264 = vpop.xlane.xlu0 %1263
      %v1265 = vadd.f32 %v1256, %v1264
      %1266 = vst.msk [vmem:[%s6] sm:$0xff] %vm1254, %v1265
      %p1267 = scmp.lt.s32.totalorder %s18, 1
      %s1268 = scalar_select %p1267, %s18, 1
      %s1269 = smul.addr %s1268, 3
      %s1270 = smul.addr %s1269, 8
      %s1271 = scalar_lea.vmem %s4, %s1270
      // Predicated region
      $region41: #{resblock_forward.4} parent=35 // pred_check
        %p1272 = pneg %p125
      $region42: #{resblock_forward.4} parent=35 // pred_check_branch
        %1274 = sbr.rel (%p1272) target = $region44
      $region43: #{resblock_forward.4} parent=35 // pred_region
        _
      $region44: #{resblock_forward.4} parent=35 // pred_fallthru
        _
      // Predicated region
      $region45: #{resblock_forward.4} parent=35 // pred_check
        %p1275 = pneg %p146
      $region46: #{resblock_forward.4} parent=35 // pred_check_branch
        %1277 = sbr.rel (%p1275) target = $region48
      $region47: #{resblock_forward.4} parent=35 // pred_region
        _
      $region48: #{resblock_forward.4} parent=35 // pred_fallthru
        _
      // Predicated region
      $region49: #{resblock_forward.4} parent=35 // pred_check
        %p1278 = pneg %p167
      $region50: #{resblock_forward.4} parent=35 // pred_check_branch
        %1280 = sbr.rel (%p1278) target = $region52
      $region51: #{resblock_forward.4} parent=35 // pred_region
        _
      $region52: #{resblock_forward.4} parent=35 // pred_fallthru
        _
      // Predicated region
      $region53: #{resblock_forward.4} parent=35 // pred_check
        %p1281 = pneg %p146
      $region54: #{resblock_forward.4} parent=35 // pred_check_branch
        %1283 = sbr.rel (%p1281) target = $region56
      $region55: #{resblock_forward.4} parent=35 // pred_region
        _
      $region56: #{resblock_forward.4} parent=35 // pred_fallthru
        _
      // Predicated region
      $region57: #{resblock_forward.4} parent=35 // pred_check
        %p1284 = pneg %p167
      $region58: #{resblock_forward.4} parent=35 // pred_check_branch
        %1286 = sbr.rel (%p1284) target = $region60
      $region59: #{resblock_forward.4} parent=35 // pred_region
        _
      $region60: #{resblock_forward.4} parent=35 // pred_fallthru
        _
    $region36: #{resblock_forward.4} parent=5 // pred_fallthru
      _
    %p1287 = scmp.le.s32.totalorder 2, %s13
    // Predicated region
    $region61: #{resblock_forward.4} parent=5 // pred_check
      %p1288 = pneg %p1287
    $region62: #{resblock_forward.4} parent=5 // pred_check_branch
      %1290 = sbr.rel (%p1288) target = $region64
    $region63: #{resblock_forward.4} parent=5 // pred_region
      %s1291 = ssub.s32 %s13, 2
      // Predicated region
      $region65: #{resblock_forward.4} parent=63 // pred_check
        %p1292 = pneg %p131
      $region66: #{resblock_forward.4} parent=63 // pred_check_branch
        %1294 = sbr.rel (%p1292) target = $region68
      $region67: #{resblock_forward.4} parent=63 // pred_region
        %p1295 = scmp.lt.s32.totalorder %s19, 1
        %s1296 = scalar_select %p1295, %s19, 1
        %s1297 = smul.addr %s1296, 3
        %s1298 = smul.addr %s1297, 8
        %s1299 = scalar_lea.vmem %s4, %s1298
      $region68: #{resblock_forward.4} parent=63 // pred_fallthru
        _
    $region64: #{resblock_forward.4} parent=5 // pred_fallthru
      _
  $region6: #{resblock_forward.4} parent=0 // loop_footer
    %s17 = sadd.s32 1, %s13
  $region7: #{resblock_forward.4} parent=0 // loop_footer_branch
    %12 = sbr.rel target = $region3
  $region8: #{resblock_forward.4} parent=0 // loop_exit
    _

// kernel: resblock_forward.7
$region0: #{resblock_forward.7}
  #allocation0 [shape = 'u32[]', space=smem, size = 0x4, offset = 0x4, fixed_abs, tag = 'smem constant byte address 0x4 - core index']
  #allocation1 [shape = 'u32[144,128]{1,0:T(1,128)}', space=vmem, size = 0x12000, scoped, tag = 'internal scratch']
  %s0 = inlined_call_operand.vmem [shape: f32[2,8,288], index: 0, kind: input, shape index: {}]
  %s1 = inlined_call_operand.vmem [shape: f32[2,8,288], index: 1, kind: input, shape index: {}]
  %s2 = inlined_call_operand.vmem [shape: f32[8,1], index: 2, kind: input, shape index: {}]
  %s3 = inlined_call_operand.vmem [shape: f32[8,1], index: 3, kind: input, shape index: {}]
  %s4 = inlined_call_operand.vmem [shape: f32[8,1], index: 4, kind: input, shape index: {}]
  %s5 = inlined_call_operand.vmem [shape: f32[8,1], index: 5, kind: input, shape index: {}]
  %s6 = inlined_call_operand.vmem [shape: f32[2,8,288], index: 6, kind: output, shape index: {}]
  %s7 = sld [smem:[#allocation0]]
  $region57: #{resblock_forward.7} parent=0
    _
  %s9 = ssub.s32 1, %s7
  %s10 = scalar_select 0, %s9, %s7
  loop: start=0, step=1, limit=4
  $region2: #{resblock_forward.7} parent=0 // loop_pre_header
    _
  $region3: #{resblock_forward.7} parent=0 // loop_header
    %s12 = sphi 0, %s16
    %p13 = scmp.ge.s32.totalorder %s12, 4
    %s22 = sphi 0, %s24
    %s25 = sphi 0, %s22
    %s26 = sphi 0, %s25
    %s42 = sphi 0, %s26
    %s48 = sphi 0, %s50
    %s51 = sphi 0, %s48
    %s52 = sphi 0, %s51
    %s68 = sphi 0, %s52
    %s72 = sphi 0, %s72
    %s74 = sphi 0, %s72
    %s75 = sphi 0, %s74
    %s89 = sphi 0, %s75
    %s93 = sphi 0, %s93
    %s95 = sphi 0, %s93
    %s96 = sphi 0, %s95
    %s110 = sphi 0, %s96
    %s114 = sphi 0, %s114
    %s116 = sphi 0, %s114
    %s117 = sphi 0, %s116
    %s131 = sphi 0, %s117
    %s135 = sphi 0, %s135
    %s137 = sphi 0, %s135
    %s138 = sphi 0, %s137
    %s152 = sphi 0, %s138
    %s158 = sphi 0, %s160
    %s161 = sphi 0, %s158
    %s162 = sphi 0, %s161
    %s178 = sphi 0, %s162
  $region4: #{resblock_forward.7} parent=0 // loop_header_branch
    %15 = sbr.rel (%p13) target = $region8
  $region5: #{resblock_forward.7} parent=0 // loop_body
    %s17 = ssub.s32 %s12, 1
    %s18 = ssub.s32 %s12, 2
    %s19 = sadd.s32 %s12, 1
    %s20 = ssub.s32 %s12, %s19
    %p21 = scmp.eq.s32.totalorder %s20, 0
    %s23 = sadd.s32 %s22, 1
    %s24 = scalar_select %p21, %s22, %s23
    %p27 = pneg %p21
    %p28 = scmp.eq.s32.totalorder %s12, 1
    %p29 = por %p27, %p28
    %p30 = scmp.ne.s32.totalorder %s22, %s25
    %p31 = scmp.eq.s32.totalorder %s12, 0
    %p32 = por %p30, %p31
    %p33 = scmp.ne.s32.totalorder %s22, %s25
    %p34 = scmp.eq.s32.totalorder %s17, 1
    %p35 = por %p33, %p34
    %p36 = scmp.ne.s32.totalorder %s25, %s26
    %p37 = scmp.eq.s32.totalorder %s17, 0
    %p38 = por %p36, %p37
    %p39 = scmp.ne.s32.totalorder %s25, %s26
    %p40 = scmp.eq.s32.totalorder %s18, 1
    %p41 = por %p39, %p40
    %p43 = scmp.ne.s32.totalorder %s26, %s42
    %p44 = scmp.eq.s32.totalorder %s18, 0
    %p45 = por %p43, %p44
    %s46 = ssub.s32 %s12, %s19
    %p47 = scmp.eq.s32.totalorder %s46, 0
    %s49 = sadd.s32 %s48, 1
    %s50 = scalar_select %p47, %s48, %s49
    %p53 = pneg %p47
    %p54 = scmp.eq.s32.totalorder %s12, 1
    %p55 = por %p53, %p54
    %p56 = scmp.ne.s32.totalorder %s48, %s51
    %p57 = scmp.eq.s32.totalorder %s12, 0
    %p58 = por %p56, %p57
    %p59 = scmp.ne.s32.totalorder %s48, %s51
    %p60 = scmp.eq.s32.totalorder %s17, 1
    %p61 = por %p59, %p60
    %p62 = scmp.ne.s32.totalorder %s51, %s52
    %p63 = scmp.eq.s32.totalorder %s17, 0
    %p64 = por %p62, %p63
    %p65 = scmp.ne.s32.totalorder %s51, %s52
    %p66 = scmp.eq.s32.totalorder %s18, 1
    %p67 = por %p65, %p66
    %p69 = scmp.ne.s32.totalorder %s52, %s68
    %p70 = scmp.eq.s32.totalorder %s18, 0
    %p71 = por %p69, %p70
    %s73 = sadd.s32 %s72, 1
    %p76 = scmp.eq.s32.totalorder %s12, 1
    %p77 = scmp.ne.s32.totalorder %s72, %s74
    %p78 = scmp.eq.s32.totalorder %s12, 0
    %p79 = por %p77, %p78
    %p80 = scmp.ne.s32.totalorder %s72, %s74
    %p81 = scmp.eq.s32.totalorder %s17, 1
    %p82 = por %p80, %p81
    %p83 = scmp.ne.s32.totalorder %s74, %s75
    %p84 = scmp.eq.s32.totalorder %s17, 0
    %p85 = por %p83, %p84
    %p86 = scmp.ne.s32.totalorder %s74, %s75
    %p87 = scmp.eq.s32.totalorder %s18, 1
    %p88 = por %p86, %p87
    %p90 = scmp.ne.s32.totalorder %s75, %s89
    %p91 = scmp.eq.s32.totalorder %s18, 0
    %p92 = por %p90, %p91
    %s94 = sadd.s32 %s93, 1
    %p97 = scmp.eq.s32.totalorder %s12, 1
    %p98 = scmp.ne.s32.totalorder %s93, %s95
    %p99 = scmp.eq.s32.totalorder %s12, 0
    %p100 = por %p98, %p99
    %p101 = scmp.ne.s32.totalorder %s93, %s95
    %p102 = scmp.eq.s32.totalorder %s17, 1
    %p103 = por %p101, %p102
    %p104 = scmp.ne.s32.totalorder %s95, %s96
    %p105 = scmp.eq.s32.totalorder %s17, 0
    %p106 = por %p104, %p105
    %p107 = scmp.ne.s32.totalorder %s95, %s96
    %p108 = scmp.eq.s32.totalorder %s18, 1
    %p109 = por %p107, %p108
    %p111 = scmp.ne.s32.totalorder %s96, %s110
    %p112 = scmp.eq.s32.totalorder %s18, 0
    %p113 = por %p111, %p112
    %s115 = sadd.s32 %s114, 1
    %p118 = scmp.eq.s32.totalorder %s12, 1
    %p119 = scmp.ne.s32.totalorder %s114, %s116
    %p120 = scmp.eq.s32.totalorder %s12, 0
    %p121 = por %p119, %p120
    %p122 = scmp.ne.s32.totalorder %s114, %s116
    %p123 = scmp.eq.s32.totalorder %s17, 1
    %p124 = por %p122, %p123
    %p125 = scmp.ne.s32.totalorder %s116, %s117
    %p126 = scmp.eq.s32.totalorder %s17, 0
    %p127 = por %p125, %p126
    %p128 = scmp.ne.s32.totalorder %s116, %s117
    %p129 = scmp.eq.s32.totalorder %s18, 1
    %p130 = por %p128, %p129
    %p132 = scmp.ne.s32.totalorder %s117, %s131
    %p133 = scmp.eq.s32.totalorder %s18, 0
    %p134 = por %p132, %p133
    %s136 = sadd.s32 %s135, 1
    %p139 = scmp.eq.s32.totalorder %s12, 1
    %p140 = scmp.ne.s32.totalorder %s135, %s137
    %p141 = scmp.eq.s32.totalorder %s12, 0
    %p142 = por %p140, %p141
    %p143 = scmp.ne.s32.totalorder %s135, %s137
    %p144 = scmp.eq.s32.totalorder %s17, 1
    %p145 = por %p143, %p144
    %p146 = scmp.ne.s32.totalorder %s137, %s138
    %p147 = scmp.eq.s32.totalorder %s17, 0
    %p148 = por %p146, %p147
    %p149 = scmp.ne.s32.totalorder %s137, %s138
    %p150 = scmp.eq.s32.totalorder %s18, 1
    %p151 = por %p149, %p150
    %p153 = scmp.ne.s32.totalorder %s138, %s152
    %p154 = scmp.eq.s32.totalorder %s18, 0
    %p155 = por %p153, %p154
    %s156 = ssub.s32 %s12, %s19
    %p157 = scmp.eq.s32.totalorder %s156, 0
    %s159 = sadd.s32 %s158, 1
    %s160 = scalar_select %p157, %s158, %s159
    %p163 = pneg %p157
    %p164 = scmp.eq.s32.totalorder %s12, 1
    %p165 = por %p163, %p164
    %p166 = scmp.ne.s32.totalorder %s158, %s161
    %p167 = scmp.eq.s32.totalorder %s12, 0
    %p168 = por %p166, %p167
    %p169 = scmp.ne.s32.totalorder %s158, %s161
    %p170 = scmp.eq.s32.totalorder %s17, 1
    %p171 = por %p169, %p170
    %p172 = scmp.ne.s32.totalorder %s161, %s162
    %p173 = scmp.eq.s32.totalorder %s17, 0
    %p174 = por %p172, %p173
    %p175 = scmp.ne.s32.totalorder %s161, %s162
    %p176 = scmp.eq.s32.totalorder %s18, 1
    %p177 = por %p175, %p176
    %p179 = scmp.ne.s32.totalorder %s162, %s178
    %p180 = scmp.eq.s32.totalorder %s18, 0
    %p181 = por %p179, %p180
    %p182 = scmp.le.s32.totalorder 1, %s12
    %p183 = scmp.lt.s32.totalorder %s12, 3
    %p184 = pnand %p182, %p183
    %p185 = pneg %p184
    // Predicated region
    $region9: #{resblock_forward.7} parent=5 // pred_check
      _
    $region10: #{resblock_forward.7} parent=5 // pred_check_branch
      %187 = sbr.rel (%p184) target = $region12
    $region11: #{resblock_forward.7} parent=5 // pred_region
      %s188 = ssub.s32 %s12, 1
      // Predicated region
      $region13: #{resblock_forward.7} parent=11 // pred_check
        %p189 = pneg %p85
      $region14: #{resblock_forward.7} parent=11 // pred_check_branch
        %191 = sbr.rel (%p189) target = $region16
      $region15: #{resblock_forward.7} parent=11 // pred_region
        _
      $region16: #{resblock_forward.7} parent=11 // pred_fallthru
        _
      // Predicated region
      $region17: #{resblock_forward.7} parent=11 // pred_check
        %p192 = pneg %p106
      $region18: #{resblock_forward.7} parent=11 // pred_check_branch
        %194 = sbr.rel (%p192) target = $region20
      $region19: #{resblock_forward.7} parent=11 // pred_region
        _
      $region20: #{resblock_forward.7} parent=11 // pred_fallthru
        _
      // Predicated region
      $region21: #{resblock_forward.7} parent=11 // pred_check
        %p195 = pneg %p127
      $region22: #{resblock_forward.7} parent=11 // pred_check_branch
        %197 = sbr.rel (%p195) target = $region24
      $region23: #{resblock_forward.7} parent=11 // pred_region
        _
      $region24: #{resblock_forward.7} parent=11 // pred_fallthru
        _
      // Predicated region
      $region25: #{resblock_forward.7} parent=11 // pred_check
        %p198 = pneg %p148
      $region26: #{resblock_forward.7} parent=11 // pred_check_branch
        %200 = sbr.rel (%p198) target = $region28
      $region27: #{resblock_forward.7} parent=11 // pred_region
        _
      $region28: #{resblock_forward.7} parent=11 // pred_fallthru
        _
    $region12: #{resblock_forward.7} parent=5 // pred_fallthru
      _
    %p201 = scmp.lt.s32.totalorder %s12, 2
    // Predicated region
    $region29: #{resblock_forward.7} parent=5 // pred_check
      %p202 = pneg %p201
    $region30: #{resblock_forward.7} parent=5 // pred_check_branch
      %204 = sbr.rel (%p202) target = $region32
    $region31: #{resblock_forward.7} parent=5 // pred_region
      // Predicated region
      $region33: #{resblock_forward.7} parent=31 // pred_check
        %p205 = pneg %p32
      $region34: #{resblock_forward.7} parent=31 // pred_check_branch
        %207 = sbr.rel (%p205) target = $region36
      $region35: #{resblock_forward.7} parent=31 // pred_region
        %p208 = scmp.lt.s32.totalorder %s12, 1
        %s209 = scalar_select %p208, %s12, 1
        %s210 = smul.addr %s209, 3
        %s211 = smul.addr %s210, 8
        %s212 = scalar_lea.vmem %s0, %s211
      $region36: #{resblock_forward.7} parent=31 // pred_fallthru
        _
      // Predicated region
      $region37: #{resblock_forward.7} parent=31 // pred_check
        %p213 = pneg %p58
      $region38: #{resblock_forward.7} parent=31 // pred_check_branch
        %215 = sbr.rel (%p213) target = $region40
      $region39: #{resblock_forward.7} parent=31 // pred_region
        %p216 = scmp.lt.s32.totalorder %s12, 1
        %s217 = scalar_select %p216, %s12, 1
        %s218 = smul.addr %s217, 3
        %s219 = smul.addr %s218, 8
        %s220 = scalar_lea.vmem %s1, %s219
      $region40: #{resblock_forward.7} parent=31 // pred_fallthru
        _
    $region32: #{resblock_forward.7} parent=5 // pred_fallthru
      _
    %p221 = scmp.le.s32.totalorder 1, %s12
    %p222 = scmp.lt.s32.totalorder %s12, 3
    %p223 = pnand %p221, %p222
    %p224 = pneg %p223
    // Predicated region
    $region41: #{resblock_forward.7} parent=5 // pred_check
      _
    $region42: #{resblock_forward.7} parent=5 // pred_check_branch
      %226 = sbr.rel (%p223) target = $region44
    $region43: #{resblock_forward.7} parent=5 // pred_region
      %s227 = ssub.s32 %s12, 1
      %p228 = scmp.lt.s32.totalorder %s17, 1
      %s229 = scalar_select %p228, %s17, 1
      %s230 = smul.addr %s229, 3
      %s231 = smul.addr %s230, 8
      %s232 = scalar_lea.vmem %s0, %s231
      %p233 = pneg %p38
      %p234 = pneg %p35
      %p235 = scmp.lt.s32.totalorder %s17, 1
      %s236 = scalar_select %p235, %s17, 1
      %s237 = smul.addr %s236, 3
      %s238 = smul.addr %s237, 8
      %s239 = scalar_lea.vmem %s1, %s238
      %p240 = pneg %p64
      %p241 = pneg %p61
      %p242 = pneg %p85
      %p243 = pneg %p82
      %p244 = pneg %p106
      %p245 = pneg %p103
      %p246 = pneg %p127
      %p247 = pneg %p124
      %p248 = pneg %p148
      %p249 = pneg %p145
      %p250 = pneg %p174
      %p251 = pneg %p171
      %p252 = scmp.lt.s32.totalorder %s17, 1
      %s253 = scalar_select %p252, %s17, 1
      %s254 = smul.addr %s253, 3
      %s255 = smul.addr %s254, 8
      %s256 = scalar_lea.vmem %s6, %s255
      %p257 = scmp.lt.s32.totalorder %s17, 1
      %s258 = scalar_select %p257, %s17, 1
      %s259 = smul.addr %s258, 3
      %s260 = smul.addr %s259, 8
      %s261 = scalar_lea.vmem %s0, %s260
      %p262 = scmp.lt.s32.totalorder %s17, 1
      %s263 = scalar_select %p262, %s17, 1
      %s264 = smul.addr %s263, 3
      %s265 = smul.addr %s264, 8
      %s266 = scalar_lea.vmem %s1, %s265
      %p267 = scmp.lt.s32.totalorder %s17, 1
      %s268 = scalar_select %p267, %s17, 1
      %s269 = smul.addr %s268, 3
      %s270 = smul.addr %s269, 8
      %s271 = scalar_lea.vmem %s6, %s270
      %v272 = vld [vmem:[%s2] sm:$0xff]
      %v273 = vmul.f32 %v272, 0.001953125
      %v274 = vld [vmem:[%s3] sm:$0xff]
      %v275 = vmul.f32 %v274, 0.001953125
      %v276 = vmul.f32 %v273, %v273
      %v277 = vsub.f32 %v275, %v276
      %v278 = vmax.f32 %v277, 0.0
      %v279 = vld [vmem:[%s4] sm:$0xff]
      %v280 = vadd.f32 %v278, 1e-05
      %v281 = vrsqrt.pop %v280
      %v282 = vmul.f32 %v279, %v281
      %v283 = vld [vmem:[%s5] sm:$0xff]
      %v284 = vmul.f32 %v273, %v282
      %v285 = vsub.f32 %v283, %v284
      %v286 = vld [vmem:[%s261] sm:$0xff]
      %v287 = vld [vmem:[%s261 + $0x8] sm:$0xff]
      %v288 = vld [vmem:[%s261 + $0x10] sm:$0xff]
      %290 = vset.pattern.permute.xlu0 0
      %291 = vperm.xlu0 %290, %v282
      %v292 = vpop.permute.xlu0 %291
      %v294 = vmul.f32 %v286, %v292
      %v295 = vmul.f32 %v287, %v292
      %v296 = vmul.f32 %v288, %v292
      %298 = vset.pattern.permute.xlu0 0
      %299 = vperm.xlu0 %298, %v285
      %v300 = vpop.permute.xlu0 %299
      %v302 = vadd.f32 %v294, %v300
      %v303 = vadd.f32 %v295, %v300
      %v304 = vadd.f32 %v296, %v300
      %v305 = vld [vmem:[%s266] sm:$0xff]
      %v306 = vld [vmem:[%s266 + $0x8] sm:$0xff]
      %v307 = vld [vmem:[%s266 + $0x10] sm:$0xff]
      %v308 = vadd.f32 %v305, %v302
      %v309 = vadd.f32 %v306, %v303
      %v310 = vadd.f32 %v307, %v304
      %v311 = vmax.f32 %v308, 0.0
      %v312 = vmax.f32 %v309, 0.0
      %v313 = vmax.f32 %v310, 0.0
      %314 = vst [vmem:[%s271] sm:$0xff] %v311
      %315 = vst [vmem:[%s271 + $0x8] sm:$0xff] %v312
      %vm316 = vcmask 261120
      %317 = vst.msk [vmem:[%s271 + $0x10] sm:$0xff] %vm316, %v313
      %p318 = scmp.lt.s32.totalorder %s17, 1
      %s319 = scalar_select %p318, %s17, 1
      %s320 = smul.addr %s319, 3
      %s321 = smul.addr %s320, 8
      %s322 = scalar_lea.vmem %s6, %s321
      // Predicated region
      $region45: #{resblock_forward.7} parent=43 // pred_check
        %p323 = pneg %p171
      $region46: #{resblock_forward.7} parent=43 // pred_check_branch
        %325 = sbr.rel (%p323) target = $region48
      $region47: #{resblock_forward.7} parent=43 // pred_region
        _
      $region48: #{resblock_forward.7} parent=43 // pred_fallthru
        _
    $region44: #{resblock_forward.7} parent=5 // pred_fallthru
      _
    %p326 = scmp.le.s32.totalorder 2, %s12
    // Predicated region
    $region49: #{resblock_forward.7} parent=5 // pred_check
      %p327 = pneg %p326
    $region50: #{resblock_forward.7} parent=5 // pred_check_branch
      %329 = sbr.rel (%p327) target = $region52
    $region51: #{resblock_forward.7} parent=5 // pred_region
      %s330 = ssub.s32 %s12, 2
      // Predicated region
      $region53: #{resblock_forward.7} parent=51 // pred_check
        %p331 = pneg %p177
      $region54: #{resblock_forward.7} parent=51 // pred_check_branch
        %333 = sbr.rel (%p331) target = $region56
      $region55: #{resblock_forward.7} parent=51 // pred_region
        %p334 = scmp.lt.s32.totalorder %s18, 1
        %s335 = scalar_select %p334, %s18, 1
        %s336 = smul.addr %s335, 3
        %s337 = smul.addr %s336, 8
        %s338 = scalar_lea.vmem %s6, %s337
      $region56: #{resblock_forward.7} parent=51 // pred_fallthru
        _
    $region52: #{resblock_forward.7} parent=5 // pred_fallthru
      _
  $region6: #{resblock_forward.7} parent=0 // loop_footer
    %s16 = sadd.s32 1, %s12
  $region7: #{resblock_forward.7} parent=0 // loop_footer_branch
    %11 = sbr.rel target = $region3
  $region8: #{resblock_forward.7} parent=0 // loop_exit
    _

</llo_original>
